<compile_context>
chip_gen: v5e
topology: v5e:2x2
jax: 0.10.0
libtpu: 0.0.40
codegen_flags: <defaults>
</compile_context>

<pallas_src>
import math
import functools

import jax
import jax.numpy as jnp
from jax.experimental import pallas as pl
from jax.experimental.pallas import tpu as pltpu

LN_EPS = 1e-5


# --------------------------------------------------------- kernel helpers ---

def _layernorm(x, gamma, beta):
    # x: (L, C); gamma/beta: (1, C)
    mu = jnp.mean(x, axis=-1, keepdims=True)
    var = jnp.mean((x - mu) ** 2, axis=-1, keepdims=True)
    inv = jax.lax.rsqrt(var + LN_EPS)
    return (x - mu) * inv * gamma + beta


def _gelu_exact(x):
    # PyTorch nn.GELU() default (erf form).
    return 0.5 * x * (1.0 + jax.lax.erf(x * (1.0 / math.sqrt(2.0))))


def _split_heads(x, nheads, head_dim):
    # (L, nheads*head_dim) -> (nheads, L, head_dim).
    # Static lane slices stacked along a new (untiled) leading axis; every
    # subsequent matmul is batched over heads.
    return jnp.stack(
        [x[:, h * head_dim:(h + 1) * head_dim] for h in range(nheads)], axis=0)


def _mha(q_h, k_h, v_h, wo_h):
    # q_h/k_h: (H, Lq/Lk, dqk)   v_h: (H, Lk, dv)   wo_h: (H, dv, C)
    # q_h is already pre-scaled by 1/sqrt(dqk).
    s = jnp.einsum('hqd,hkd->hqk', q_h, k_h,
                   preferred_element_type=jnp.float32)       # no K^T materialized
    s = s - jnp.max(s, axis=-1, keepdims=True)
    p = jnp.exp(s)
    p = p * pl.reciprocal(jnp.sum(p, axis=-1, keepdims=True), approx=True)
    o = jnp.einsum('hqk,hkd->hqd', p, v_h,
                   preferred_element_type=jnp.float32)
    o = jnp.einsum('hqd,hdc->hqc', o, wo_h,
                   preferred_element_type=jnp.float32)        # per-head W_O
    return jnp.sum(o, axis=0)                                 # (Lq, C)


def _mlp(x, g, b, w1, b1, w2, b2):
    h = _layernorm(x, g, b)
    h = _gelu_exact(jnp.dot(h, w1, preferred_element_type=jnp.float32) + b1)
    return jnp.dot(h, w2, preferred_element_type=jnp.float32) + b2


# --------------------------------------------------------------- kernels ----

def cross_block_kernel(nxheads, dqk, dv,
                       lat_ref, x_ref,
                       lnq_g, lnq_b, lnkv_g, lnkv_b,
                       wq, wkv, wo_h, lnm_g, lnm_b, w1, b1, w2, b2,
                       out_ref):
    lat = lat_ref[0]                          # (Lq, C)
    kv = x_ref[0]                             # (Lk, Cin)
    cqk = nxheads * dqk

    q_in = _layernorm(lat, lnq_g[...], lnq_b[...])
    kv_in = _layernorm(kv, lnkv_g[...], lnkv_b[...])

    q = jnp.dot(q_in, wq[...], preferred_element_type=jnp.float32)
    q = q * (1.0 / math.sqrt(dqk))            # pre-scale Q
    kvp = jnp.dot(kv_in, wkv[...], preferred_element_type=jnp.float32)  # fused K|V

    q_h = _split_heads(q, nxheads, dqk)
    k_h = _split_heads(kvp[:, :cqk], nxheads, dqk)
    v_h = _split_heads(kvp[:, cqk:], nxheads, dv)

    r = lat + _mha(q_h, k_h, v_h, wo_h[...])                            # residual 1
    out_ref[0] = r + _mlp(r, lnm_g[...], lnm_b[...],
                          w1[...], b1[...], w2[...], b2[...])           # residual 2


def transformer_stack_kernel(nheads, dh,
                             lat_ref,
                             ln1_g, ln1_b, wqkv, wo_h, ln2_g, ln2_b,
                             w1, b1, w2, b2,
                             out_ref, state):
    # grid = (batch, layer); latents stay resident in `state` across layers.
    l = pl.program_id(1)

    @pl.when(l == 0)
    def _():
        state[...] = lat_ref[0]

    c = nheads * dh
    x = state[...]                                                      # (Lq, C)
    xn = _layernorm(x, ln1_g[0], ln1_b[0])                              # single LN (q == kv)
    qkv = jnp.dot(xn, wqkv[0], preferred_element_type=jnp.float32)      # fused Q|K|V

    q_h = _split_heads(qkv[:, :c] * (1.0 / math.sqrt(dh)), nheads, dh)
    k_h = _split_heads(qkv[:, c:2 * c], nheads, dh)
    v_h = _split_heads(qkv[:, 2 * c:], nheads, dh)

    r = x + _mha(q_h, k_h, v_h, wo_h[0])
    y = r + _mlp(r, ln2_g[0], ln2_b[0], w1[0], b1[0], w2[0], b2[0])

    state[...] = y
    out_ref[0] = y


# -------------------------------------------------------------- wrappers ----

CROSS_KEYS = ("lnq_g", "lnq_b", "lnkv_g", "lnkv_b",
              "wq", "wkv", "wo_h", "lnm_g", "lnm_b", "w1", "b1", "w2", "b2")

STACK_KEYS = ("ln1_g", "ln1_b", "wqkv", "wo_h", "ln2_g", "ln2_b",
              "w1", "b1", "w2", "b2")


def run_cross_block(latents, x, p, nxheads):
    B, Lq, C = latents.shape
    _, Lk, Cin = x.shape
    cqk = p["wq"].shape[1]
    cv = p["wv"].shape[1]
    dqk, dv = cqk // nxheads, cv // nxheads

    packed = dict(p)
    packed["wkv"] = jnp.concatenate([p["wk"], p["wv"]], axis=1)   # (Cin, cqk+cv)
    packed["wo_h"] = p["wo"].reshape(nxheads, dv, C)              # (H, dv, C)
    weights = [packed[k] for k in CROSS_KEYS]

    def full_spec(arr):
        nd = arr.ndim
        return pl.BlockSpec(arr.shape, lambda b, nd=nd: (0,) * nd)

    kernel = functools.partial(cross_block_kernel, nxheads, dqk, dv)
    return pl.pallas_call(
        kernel,
        out_shape=jax.ShapeDtypeStruct((B, Lq, C), latents.dtype),
        grid=(B,),
        in_specs=[pl.BlockSpec((1, Lq, C), lambda b: (b, 0, 0)),
                  pl.BlockSpec((1, Lk, Cin), lambda b: (b, 0, 0))]
                 + [full_spec(w) for w in weights],
        out_specs=pl.BlockSpec((1, Lq, C), lambda b: (b, 0, 0)),
        compiler_params=pltpu.CompilerParams(
            dimension_semantics=("parallel",)),
    )(latents, x, *weights)


def pack_transformer_stack(tblocks, nheads):
    C = tblocks[0]["wq"].shape[0]
    dh = C // nheads

    def per_layer(p):
        return dict(
            ln1_g=p["ln1_g"], ln1_b=p["ln1_b"],
            wqkv=jnp.concatenate([p["wq"], p["wk"], p["wv"]], axis=1),  # (C, 3C)
            wo_h=p["wo"].reshape(nheads, dh, C),                        # (H, dh, C)
            ln2_g=p["ln2_g"], ln2_b=p["ln2_b"],
            w1=p["w1"], b1=p["b1"], w2=p["w2"], b2=p["b2"])

    layers = [per_layer(p) for p in tblocks]
    return {k: jnp.stack([lp[k] for lp in layers], axis=0) for k in STACK_KEYS}


def run_transformer_stack(latents, stacked, nheads):
    B, Lq, C = latents.shape
    nl = stacked["wqkv"].shape[0]
    dh = C // nheads
    weights = [stacked[k] for k in STACK_KEYS]

    def layer_spec(arr):
        nd = arr.ndim
        return pl.BlockSpec((1,) + arr.shape[1:],
                            lambda b, l, nd=nd: (l,) + (0,) * (nd - 1))

    kernel = functools.partial(transformer_stack_kernel, nheads, dh)
    return pl.pallas_call(
        kernel,
        out_shape=jax.ShapeDtypeStruct((B, Lq, C), latents.dtype),
        grid=(B, nl),
        in_specs=[pl.BlockSpec((1, Lq, C), lambda b, l: (b, 0, 0))]
                 + [layer_spec(w) for w in weights],
        out_specs=pl.BlockSpec((1, Lq, C), lambda b, l: (b, 0, 0)),
        scratch_shapes=[pltpu.VMEM((Lq, C), jnp.float32)],
        compiler_params=pltpu.CompilerParams(
            dimension_semantics=("parallel", "arbitrary")),
    )(latents, *weights)


def perceiver_block(latents, x, cross_params, tblock_params, nxheads, nheads):
    latents = run_cross_block(latents, x, cross_params, nxheads)
    if tblock_params:
        latents = run_transformer_stack(
            latents, pack_transformer_stack(tblock_params, nheads), nheads)
    return latents


# ------------------------------------------------------ parameter set-up ----

def _linear_w(key, fan_in, fan_out):
    bound = 1.0 / math.sqrt(fan_in)
    return jax.random.uniform(key, (fan_in, fan_out),
                              minval=-bound, maxval=bound, dtype=jnp.float32)


def _linear_b(key, fan_in, fan_out):
    bound = 1.0 / math.sqrt(fan_in)
    return jax.random.uniform(key, (1, fan_out),
                              minval=-bound, maxval=bound, dtype=jnp.float32)


def make_cross_block_params(key, latent_channels, in_channels):
    C, Cin = latent_channels, in_channels
    ks = jax.random.split(key, 8)
    return dict(
        lnq_g=jnp.ones((1, C), jnp.float32), lnq_b=jnp.zeros((1, C), jnp.float32),
        lnkv_g=jnp.ones((1, Cin), jnp.float32), lnkv_b=jnp.zeros((1, Cin), jnp.float32),
        wq=_linear_w(ks[0], C, C), wk=_linear_w(ks[1], Cin, C),
        wv=_linear_w(ks[2], Cin, C), wo=_linear_w(ks[3], C, C),
        lnm_g=jnp.ones((1, C), jnp.float32), lnm_b=jnp.zeros((1, C), jnp.float32),
        w1=_linear_w(ks[4], C, 4 * C), b1=_linear_b(ks[5], C, 4 * C),
        w2=_linear_w(ks[6], 4 * C, C), b2=_linear_b(ks[7], 4 * C, C),
    )


def make_transformer_block_params(key, channels):
    C = channels
    ks = jax.random.split(key, 8)
    return dict(
        ln1_g=jnp.ones((1, C), jnp.float32), ln1_b=jnp.zeros((1, C), jnp.float32),
        wq=_linear_w(ks[0], C, C), wk=_linear_w(ks[1], C, C),
        wv=_linear_w(ks[2], C, C), wo=_linear_w(ks[3], C, C),
        ln2_g=jnp.ones((1, C), jnp.float32), ln2_b=jnp.zeros((1, C), jnp.float32),
        w1=_linear_w(ks[4], C, 4 * C), b1=_linear_b(ks[5], C, 4 * C),
        w2=_linear_w(ks[6], 4 * C, C), b2=_linear_b(ks[7], 4 * C, C),
    )


# ---------------------------------------------------- pure-JAX reference ----

def _attn_mlp_ref(lat, kv, gq, bq, gkv, bkv, wq, wk, wv, wo,
                  gm, bm, w1, b1, w2, b2, nheads):
    def ln(x, g, b):
        mu = x.mean(-1, keepdims=True)
        var = ((x - mu) ** 2).mean(-1, keepdims=True)
        return (x - mu) / jnp.sqrt(var + LN_EPS) * g + b

    B, Lq, C = lat.shape
    _, Lk, Cin = kv.shape
    cqk, cv = wq.shape[1], wv.shape[1]
    dqk, dv = cqk // nheads, cv // nheads

    qi = ln(lat, gq, bq)
    ki = ln(kv, gkv, bkv)
    Q = (qi @ wq).reshape(B, Lq, nheads, dqk).transpose(0, 2, 1, 3)
    K = (ki @ wk).reshape(B, Lk, nheads, dqk).transpose(0, 2, 1, 3)
    V = (ki @ wv).reshape(B, Lk, nheads, dv).transpose(0, 2, 1, 3)
    a = jax.nn.softmax(Q @ jnp.swapaxes(K, -1, -2) / math.sqrt(dqk), axis=-1)
    out = (a @ V).transpose(0, 2, 1, 3).reshape(B, Lq, cv) @ wo
    r = lat + out
    h = ln(r, gm, bm)
    h = jax.nn.gelu(h @ w1 + b1, approximate=False)
    return r + h @ w2 + b2


def perceiver_ref(latents, x, cp, tps, nxheads, nheads):
    latents = _attn_mlp_ref(latents, x,
                            cp["lnq_g"], cp["lnq_b"], cp["lnkv_g"], cp["lnkv_b"],
                            cp["wq"], cp["wk"], cp["wv"], cp["wo"],
                            cp["lnm_g"], cp["lnm_b"],
                            cp["w1"], cp["b1"], cp["w2"], cp["b2"], nxheads)
    for p in tps:
        latents = _attn_mlp_ref(latents, latents,
                                p["ln1_g"], p["ln1_b"], p["ln1_g"], p["ln1_b"],
                                p["wq"], p["wk"], p["wv"], p["wo"],
                                p["ln2_g"], p["ln2_b"],
                                p["w1"], p["b1"], p["w2"], p["b2"], nheads)
    return latents


# ------------------------------------------------------------------ main ----

if __name__ == "__main__":
    # Small, PyTorch-consistent shapes ([batch, seq, channels]).
    batch = 2
    latent_channels = 32
    in_channels = 16
    latent_seq = 8
    input_seq = 16
    nheads = 4      # self-attention heads in TransformerBlocks
    nxheads = 2     # cross-attention heads
    nlayers = 2

    root = jax.random.PRNGKey(0)
    k_lat, k_x, k_cross, k_blocks = jax.random.split(root, 4)

    latents = jax.random.normal(k_lat, (batch, latent_seq, latent_channels),
                                dtype=jnp.float32)
    x = jax.random.normal(k_x, (batch, input_seq, in_channels),
                          dtype=jnp.float32)

    cross_params = make_cross_block_params(k_cross, latent_channels, in_channels)
    tblock_params = [
        make_transformer_block_params(k, latent_channels)
        for k in jax.random.split(k_blocks, nlayers)
    ]

    out = perceiver_block(latents, x, cross_params, tblock_params,
                          nxheads, nheads)
    out = jax.block_until_ready(out)

    ref = perceiver_ref(latents, x, cross_params, tblock_params,
                        nxheads, nheads)
    ref = jax.block_until_ready(ref)

    assert out.shape == (batch, latent_seq, latent_channels)
    assert jnp.allclose(out, ref, rtol=5e-2, atol=5e-2), (
        float(jnp.max(jnp.abs(out - ref))))

    print("KERNEL_OK")
</pallas_src>

<mosaic_0001>
module attributes {stable_mosaic.version = 11 : i64} {
  func.func @cross_block_kernel(%arg0: i32, %arg1: memref<1x8x32xf32, #tpu.memory_space<vmem>>, %arg2: memref<1x16x16xf32, #tpu.memory_space<vmem>>, %arg3: memref<1x32xf32, #tpu.memory_space<vmem>>, %arg4: memref<1x32xf32, #tpu.memory_space<vmem>>, %arg5: memref<1x16xf32, #tpu.memory_space<vmem>>, %arg6: memref<1x16xf32, #tpu.memory_space<vmem>>, %arg7: memref<32x32xf32, #tpu.memory_space<vmem>>, %arg8: memref<16x64xf32, #tpu.memory_space<vmem>>, %arg9: memref<2x16x32xf32, #tpu.memory_space<vmem>>, %arg10: memref<1x32xf32, #tpu.memory_space<vmem>>, %arg11: memref<1x32xf32, #tpu.memory_space<vmem>>, %arg12: memref<32x128xf32, #tpu.memory_space<vmem>>, %arg13: memref<1x128xf32, #tpu.memory_space<vmem>>, %arg14: memref<128x32xf32, #tpu.memory_space<vmem>>, %arg15: memref<1x32xf32, #tpu.memory_space<vmem>>, %arg16: memref<1x8x32xf32, #tpu.memory_space<vmem>>) attributes {dimension_semantics = [#tpu.dimension_semantics<parallel>], iteration_bounds = array<i64: 2>, scalar_prefetch = 0 : i64, scratch_operands = 0 : i64, tpu.core_type = #tpu.core_type<tc>, window_params = [{transform_indices = @transform_0, window_bounds = array<i64: 1, 8, 32>}, {transform_indices = @transform_1, window_bounds = array<i64: 1, 16, 16>}, {pipeline_mode = #tpu.pipeline_mode<synchronous>, transform_indices = @transform_2, window_bounds = array<i64: 1, 32>}, {pipeline_mode = #tpu.pipeline_mode<synchronous>, transform_indices = @transform_3, window_bounds = array<i64: 1, 32>}, {pipeline_mode = #tpu.pipeline_mode<synchronous>, transform_indices = @transform_4, window_bounds = array<i64: 1, 16>}, {pipeline_mode = #tpu.pipeline_mode<synchronous>, transform_indices = @transform_5, window_bounds = array<i64: 1, 16>}, {pipeline_mode = #tpu.pipeline_mode<synchronous>, transform_indices = @transform_6, window_bounds = array<i64: 32, 32>}, {pipeline_mode = #tpu.pipeline_mode<synchronous>, transform_indices = @transform_7, window_bounds = array<i64: 16, 64>}, {pipeline_mode = #tpu.pipeline_mode<synchronous>, transform_indices = @transform_8, window_bounds = array<i64: 2, 16, 32>}, {pipeline_mode = #tpu.pipeline_mode<synchronous>, transform_indices = @transform_9, window_bounds = array<i64: 1, 32>}, {pipeline_mode = #tpu.pipeline_mode<synchronous>, transform_indices = @transform_10, window_bounds = array<i64: 1, 32>}, {pipeline_mode = #tpu.pipeline_mode<synchronous>, transform_indices = @transform_11, window_bounds = array<i64: 32, 128>}, {pipeline_mode = #tpu.pipeline_mode<synchronous>, transform_indices = @transform_12, window_bounds = array<i64: 1, 128>}, {pipeline_mode = #tpu.pipeline_mode<synchronous>, transform_indices = @transform_13, window_bounds = array<i64: 128, 32>}, {pipeline_mode = #tpu.pipeline_mode<synchronous>, transform_indices = @transform_14, window_bounds = array<i64: 1, 32>}, {transform_indices = @transform_15, window_bounds = array<i64: 1, 8, 32>}]} {
    %c0 = arith.constant 0 : index
    %c0_0 = arith.constant 0 : index
    %c0_1 = arith.constant 0 : index
    %0 = vector.load %arg1[%c0, %c0_0, %c0_1] : memref<1x8x32xf32, #tpu.memory_space<vmem>>, vector<1x8x32xf32>
    %1 = vector.shape_cast %0 : vector<1x8x32xf32> to vector<8x32xf32>
    %c0_2 = arith.constant 0 : index
    %c0_3 = arith.constant 0 : index
    %c0_4 = arith.constant 0 : index
    %2 = vector.load %arg2[%c0_2, %c0_3, %c0_4] : memref<1x16x16xf32, #tpu.memory_space<vmem>>, vector<1x16x16xf32>
    %3 = vector.shape_cast %2 : vector<1x16x16xf32> to vector<16x16xf32>
    %c0_5 = arith.constant 0 : index
    %c0_6 = arith.constant 0 : index
    %4 = vector.load %arg3[%c0_5, %c0_6] : memref<1x32xf32, #tpu.memory_space<vmem>>, vector<1x32xf32>
    %c0_7 = arith.constant 0 : index
    %c0_8 = arith.constant 0 : index
    %5 = vector.load %arg4[%c0_7, %c0_8] : memref<1x32xf32, #tpu.memory_space<vmem>>, vector<1x32xf32>
    %cst = arith.constant dense<0.000000e+00> : vector<8xf32>
    %6 = vector.multi_reduction <add>, %1, %cst [1] : vector<8x32xf32> to vector<8xf32>
    %7 = vector.shape_cast %6 : vector<8xf32> to vector<8x1xf32>
    %cst_9 = arith.constant 3.200000e+01 : f32
    %8 = vector.broadcast %cst_9 : f32 to vector<8x1xf32>
    %9 = arith.divf %7, %8 : vector<8x1xf32>
    %10 = vector.broadcast %9 : vector<8x1xf32> to vector<8x32xf32>
    %11 = arith.subf %1, %10 : vector<8x32xf32>
    %12 = arith.mulf %11, %11 : vector<8x32xf32>
    %cst_10 = arith.constant dense<0.000000e+00> : vector<8xf32>
    %13 = vector.multi_reduction <add>, %12, %cst_10 [1] : vector<8x32xf32> to vector<8xf32>
    %14 = vector.shape_cast %13 : vector<8xf32> to vector<8x1xf32>
    %cst_11 = arith.constant 3.200000e+01 : f32
    %15 = vector.broadcast %cst_11 : f32 to vector<8x1xf32>
    %16 = arith.divf %14, %15 : vector<8x1xf32>
    %cst_12 = arith.constant 9.99999974E-6 : f32
    %17 = vector.broadcast %cst_12 : f32 to vector<8x1xf32>
    %18 = arith.addf %16, %17 : vector<8x1xf32>
    %19 = math.rsqrt %18 : vector<8x1xf32>
    %20 = vector.broadcast %9 : vector<8x1xf32> to vector<8x32xf32>
    %21 = arith.subf %1, %20 : vector<8x32xf32>
    %22 = vector.broadcast %19 : vector<8x1xf32> to vector<8x32xf32>
    %23 = arith.mulf %21, %22 : vector<8x32xf32>
    %24 = vector.broadcast %4 : vector<1x32xf32> to vector<8x32xf32>
    %25 = arith.mulf %23, %24 : vector<8x32xf32>
    %26 = vector.broadcast %5 : vector<1x32xf32> to vector<8x32xf32>
    %27 = arith.addf %25, %26 : vector<8x32xf32>
    %c0_13 = arith.constant 0 : index
    %c0_14 = arith.constant 0 : index
    %28 = vector.load %arg5[%c0_13, %c0_14] : memref<1x16xf32, #tpu.memory_space<vmem>>, vector<1x16xf32>
    %c0_15 = arith.constant 0 : index
    %c0_16 = arith.constant 0 : index
    %29 = vector.load %arg6[%c0_15, %c0_16] : memref<1x16xf32, #tpu.memory_space<vmem>>, vector<1x16xf32>
    %cst_17 = arith.constant dense<0.000000e+00> : vector<16xf32>
    %30 = vector.multi_reduction <add>, %3, %cst_17 [1] : vector<16x16xf32> to vector<16xf32>
    %31 = vector.shape_cast %30 : vector<16xf32> to vector<16x1xf32>
    %cst_18 = arith.constant 1.600000e+01 : f32
    %32 = vector.broadcast %cst_18 : f32 to vector<16x1xf32>
    %33 = arith.divf %31, %32 : vector<16x1xf32>
    %34 = vector.broadcast %33 : vector<16x1xf32> to vector<16x16xf32>
    %35 = arith.subf %3, %34 : vector<16x16xf32>
    %36 = arith.mulf %35, %35 : vector<16x16xf32>
    %cst_19 = arith.constant dense<0.000000e+00> : vector<16xf32>
    %37 = vector.multi_reduction <add>, %36, %cst_19 [1] : vector<16x16xf32> to vector<16xf32>
    %38 = vector.shape_cast %37 : vector<16xf32> to vector<16x1xf32>
    %cst_20 = arith.constant 1.600000e+01 : f32
    %39 = vector.broadcast %cst_20 : f32 to vector<16x1xf32>
    %40 = arith.divf %38, %39 : vector<16x1xf32>
    %cst_21 = arith.constant 9.99999974E-6 : f32
    %41 = vector.broadcast %cst_21 : f32 to vector<16x1xf32>
    %42 = arith.addf %40, %41 : vector<16x1xf32>
    %43 = math.rsqrt %42 : vector<16x1xf32>
    %44 = vector.broadcast %33 : vector<16x1xf32> to vector<16x16xf32>
    %45 = arith.subf %3, %44 : vector<16x16xf32>
    %46 = vector.broadcast %43 : vector<16x1xf32> to vector<16x16xf32>
    %47 = arith.mulf %45, %46 : vector<16x16xf32>
    %48 = vector.broadcast %28 : vector<1x16xf32> to vector<16x16xf32>
    %49 = arith.mulf %47, %48 : vector<16x16xf32>
    %50 = vector.broadcast %29 : vector<1x16xf32> to vector<16x16xf32>
    %51 = arith.addf %49, %50 : vector<16x16xf32>
    %c0_22 = arith.constant 0 : index
    %c0_23 = arith.constant 0 : index
    %52 = vector.load %arg7[%c0_22, %c0_23] : memref<32x32xf32, #tpu.memory_space<vmem>>, vector<32x32xf32>
    %cst_24 = arith.constant dense<0.000000e+00> : vector<8x32xf32>
    %53 = tpu.matmul %27, %52, %cst_24 {dimension_numbers = #tpu.dot_dimension_numbers<[1], [0], [0], [1], [0, 0, 1, 1], [], []>} : vector<8x32xf32>, vector<32x32xf32>, vector<8x32xf32> -> vector<8x32xf32>
    %cst_25 = arith.constant 2.500000e-01 : f32
    %54 = vector.broadcast %cst_25 : f32 to vector<8x32xf32>
    %55 = arith.mulf %53, %54 : vector<8x32xf32>
    %c0_26 = arith.constant 0 : index
    %c0_27 = arith.constant 0 : index
    %56 = vector.load %arg8[%c0_26, %c0_27] : memref<16x64xf32, #tpu.memory_space<vmem>>, vector<16x64xf32>
    %cst_28 = arith.constant dense<0.000000e+00> : vector<16x64xf32>
    %57 = tpu.matmul %51, %56, %cst_28 {dimension_numbers = #tpu.dot_dimension_numbers<[1], [0], [0], [1], [0, 0, 1, 1], [], []>} : vector<16x16xf32>, vector<16x64xf32>, vector<16x64xf32> -> vector<16x64xf32>
    %58 = vector.extract_strided_slice %55 {offsets = [0, 0], sizes = [8, 16], strides = [1, 1]} : vector<8x32xf32> to vector<8x16xf32>
    %59 = vector.extract_strided_slice %55 {offsets = [0, 16], sizes = [8, 16], strides = [1, 1]} : vector<8x32xf32> to vector<8x16xf32>
    %60 = vector.shape_cast %58 : vector<8x16xf32> to vector<1x8x16xf32>
    %61 = vector.shape_cast %59 : vector<8x16xf32> to vector<1x8x16xf32>
    %62 = tpu.concatenate %60, %61 in 0 : vector<1x8x16xf32>, vector<1x8x16xf32> -> vector<2x8x16xf32>
    %63 = vector.extract_strided_slice %57 {offsets = [0, 0], sizes = [16, 32], strides = [1, 1]} : vector<16x64xf32> to vector<16x32xf32>
    %64 = vector.extract_strided_slice %63 {offsets = [0, 0], sizes = [16, 16], strides = [1, 1]} : vector<16x32xf32> to vector<16x16xf32>
    %65 = vector.extract_strided_slice %63 {offsets = [0, 16], sizes = [16, 16], strides = [1, 1]} : vector<16x32xf32> to vector<16x16xf32>
    %66 = vector.shape_cast %64 : vector<16x16xf32> to vector<1x16x16xf32>
    %67 = vector.shape_cast %65 : vector<16x16xf32> to vector<1x16x16xf32>
    %68 = tpu.concatenate %66, %67 in 0 : vector<1x16x16xf32>, vector<1x16x16xf32> -> vector<2x16x16xf32>
    %69 = vector.extract_strided_slice %57 {offsets = [0, 32], sizes = [16, 32], strides = [1, 1]} : vector<16x64xf32> to vector<16x32xf32>
    %70 = vector.extract_strided_slice %69 {offsets = [0, 0], sizes = [16, 16], strides = [1, 1]} : vector<16x32xf32> to vector<16x16xf32>
    %71 = vector.extract_strided_slice %69 {offsets = [0, 16], sizes = [16, 16], strides = [1, 1]} : vector<16x32xf32> to vector<16x16xf32>
    %72 = vector.shape_cast %70 : vector<16x16xf32> to vector<1x16x16xf32>
    %73 = vector.shape_cast %71 : vector<16x16xf32> to vector<1x16x16xf32>
    %74 = tpu.concatenate %72, %73 in 0 : vector<1x16x16xf32>, vector<1x16x16xf32> -> vector<2x16x16xf32>
    %c0_29 = arith.constant 0 : index
    %c0_30 = arith.constant 0 : index
    %c0_31 = arith.constant 0 : index
    %75 = vector.load %arg9[%c0_29, %c0_30, %c0_31] : memref<2x16x32xf32, #tpu.memory_space<vmem>>, vector<2x16x32xf32>
    "tpu.trace_start"() <{level = 10 : i32, message = "hqd,hkd->hqk"}> : () -> ()
    %cst_32 = arith.constant dense<0.000000e+00> : vector<2x8x16xf32>
    %76 = tpu.matmul %62, %68, %cst_32 {dimension_numbers = #tpu.dot_dimension_numbers<[2], [2], [1], [1], [0, 0, 0, 1, 1, 1], [0], [0]>} : vector<2x8x16xf32>, vector<2x16x16xf32>, vector<2x8x16xf32> -> vector<2x8x16xf32>
    "tpu.trace_stop"() : () -> ()
    %cst_33 = arith.constant dense<0xFF800000> : vector<2x8xf32>
    %77 = vector.multi_reduction <maximumf>, %76, %cst_33 [2] : vector<2x8x16xf32> to vector<2x8xf32>
    %78 = vector.shape_cast %77 : vector<2x8xf32> to vector<2x8x1xf32>
    %79 = vector.broadcast %78 : vector<2x8x1xf32> to vector<2x8x16xf32>
    %80 = arith.subf %76, %79 : vector<2x8x16xf32>
    %81 = math.exp %80 : vector<2x8x16xf32>
    %cst_34 = arith.constant dense<0.000000e+00> : vector<2x8xf32>
    %82 = vector.multi_reduction <add>, %81, %cst_34 [2] : vector<2x8x16xf32> to vector<2x8xf32>
    %83 = vector.shape_cast %82 : vector<2x8xf32> to vector<2x8x1xf32>
    %84 = tpu.reciprocal %83 {approx = true} : vector<2x8x1xf32> -> vector<2x8x1xf32>
    %85 = vector.broadcast %84 : vector<2x8x1xf32> to vector<2x8x16xf32>
    %86 = arith.mulf %81, %85 : vector<2x8x16xf32>
    "tpu.trace_start"() <{level = 10 : i32, message = "hqk,hkd->hqd"}> : () -> ()
    %cst_35 = arith.constant dense<0.000000e+00> : vector<2x8x16xf32>
    %87 = tpu.matmul %86, %74, %cst_35 {dimension_numbers = #tpu.dot_dimension_numbers<[2], [1], [1], [2], [0, 0, 0, 1, 1, 2], [0], [0]>} : vector<2x8x16xf32>, vector<2x16x16xf32>, vector<2x8x16xf32> -> vector<2x8x16xf32>
    "tpu.trace_stop"() : () -> ()
    "tpu.trace_start"() <{level = 10 : i32, message = "hqd,hdc->hqc"}> : () -> ()
    %cst_36 = arith.constant dense<0.000000e+00> : vector<2x8x32xf32>
    %88 = tpu.matmul %87, %75, %cst_36 {dimension_numbers = #tpu.dot_dimension_numbers<[2], [1], [1], [2], [0, 0, 0, 1, 1, 2], [0], [0]>} : vector<2x8x16xf32>, vector<2x16x32xf32>, vector<2x8x32xf32> -> vector<2x8x32xf32>
    "tpu.trace_stop"() : () -> ()
    %cst_37 = arith.constant dense<0.000000e+00> : vector<8x32xf32>
    %89 = vector.multi_reduction <add>, %88, %cst_37 [0] : vector<2x8x32xf32> to vector<8x32xf32>
    %90 = arith.addf %1, %89 : vector<8x32xf32>
    %c0_38 = arith.constant 0 : index
    %c0_39 = arith.constant 0 : index
    %91 = vector.load %arg10[%c0_38, %c0_39] : memref<1x32xf32, #tpu.memory_space<vmem>>, vector<1x32xf32>
    %c0_40 = arith.constant 0 : index
    %c0_41 = arith.constant 0 : index
    %92 = vector.load %arg11[%c0_40, %c0_41] : memref<1x32xf32, #tpu.memory_space<vmem>>, vector<1x32xf32>
    %c0_42 = arith.constant 0 : index
    %c0_43 = arith.constant 0 : index
    %93 = vector.load %arg12[%c0_42, %c0_43] : memref<32x128xf32, #tpu.memory_space<vmem>>, vector<32x128xf32>
    %c0_44 = arith.constant 0 : index
    %c0_45 = arith.constant 0 : index
    %94 = vector.load %arg13[%c0_44, %c0_45] : memref<1x128xf32, #tpu.memory_space<vmem>>, vector<1x128xf32>
    %c0_46 = arith.constant 0 : index
    %c0_47 = arith.constant 0 : index
    %95 = vector.load %arg14[%c0_46, %c0_47] : memref<128x32xf32, #tpu.memory_space<vmem>>, vector<128x32xf32>
    %c0_48 = arith.constant 0 : index
    %c0_49 = arith.constant 0 : index
    %96 = vector.load %arg15[%c0_48, %c0_49] : memref<1x32xf32, #tpu.memory_space<vmem>>, vector<1x32xf32>
    %cst_50 = arith.constant dense<0.000000e+00> : vector<8xf32>
    %97 = vector.multi_reduction <add>, %90, %cst_50 [1] : vector<8x32xf32> to vector<8xf32>
    %98 = vector.shape_cast %97 : vector<8xf32> to vector<8x1xf32>
    %cst_51 = arith.constant 3.200000e+01 : f32
    %99 = vector.broadcast %cst_51 : f32 to vector<8x1xf32>
    %100 = arith.divf %98, %99 : vector<8x1xf32>
    %101 = vector.broadcast %100 : vector<8x1xf32> to vector<8x32xf32>
    %102 = arith.subf %90, %101 : vector<8x32xf32>
    %103 = arith.mulf %102, %102 : vector<8x32xf32>
    %cst_52 = arith.constant dense<0.000000e+00> : vector<8xf32>
    %104 = vector.multi_reduction <add>, %103, %cst_52 [1] : vector<8x32xf32> to vector<8xf32>
    %105 = vector.shape_cast %104 : vector<8xf32> to vector<8x1xf32>
    %cst_53 = arith.constant 3.200000e+01 : f32
    %106 = vector.broadcast %cst_53 : f32 to vector<8x1xf32>
    %107 = arith.divf %105, %106 : vector<8x1xf32>
    %cst_54 = arith.constant 9.99999974E-6 : f32
    %108 = vector.broadcast %cst_54 : f32 to vector<8x1xf32>
    %109 = arith.addf %107, %108 : vector<8x1xf32>
    %110 = math.rsqrt %109 : vector<8x1xf32>
    %111 = vector.broadcast %100 : vector<8x1xf32> to vector<8x32xf32>
    %112 = arith.subf %90, %111 : vector<8x32xf32>
    %113 = vector.broadcast %110 : vector<8x1xf32> to vector<8x32xf32>
    %114 = arith.mulf %112, %113 : vector<8x32xf32>
    %115 = vector.broadcast %91 : vector<1x32xf32> to vector<8x32xf32>
    %116 = arith.mulf %114, %115 : vector<8x32xf32>
    %117 = vector.broadcast %92 : vector<1x32xf32> to vector<8x32xf32>
    %118 = arith.addf %116, %117 : vector<8x32xf32>
    %cst_55 = arith.constant dense<0.000000e+00> : vector<8x128xf32>
    %119 = tpu.matmul %118, %93, %cst_55 {dimension_numbers = #tpu.dot_dimension_numbers<[1], [0], [0], [1], [0, 0, 1, 1], [], []>} : vector<8x32xf32>, vector<32x128xf32>, vector<8x128xf32> -> vector<8x128xf32>
    %120 = vector.broadcast %94 : vector<1x128xf32> to vector<8x128xf32>
    %121 = arith.addf %119, %120 : vector<8x128xf32>
    %cst_56 = arith.constant 5.000000e-01 : f32
    %122 = vector.broadcast %cst_56 : f32 to vector<8x128xf32>
    %123 = arith.mulf %122, %121 : vector<8x128xf32>
    %cst_57 = arith.constant 0.707106769 : f32
    %124 = vector.broadcast %cst_57 : f32 to vector<8x128xf32>
    %125 = arith.mulf %121, %124 : vector<8x128xf32>
    %126 = math.erf %125 : vector<8x128xf32>
    %cst_58 = arith.constant 1.000000e+00 : f32
    %127 = vector.broadcast %cst_58 : f32 to vector<8x128xf32>
    %128 = arith.addf %127, %126 : vector<8x128xf32>
    %129 = arith.mulf %123, %128 : vector<8x128xf32>
    %cst_59 = arith.constant dense<0.000000e+00> : vector<8x32xf32>
    %130 = tpu.matmul %129, %95, %cst_59 {dimension_numbers = #tpu.dot_dimension_numbers<[1], [0], [0], [1], [0, 0, 1, 1], [], []>} : vector<8x128xf32>, vector<128x32xf32>, vector<8x32xf32> -> vector<8x32xf32>
    %131 = vector.broadcast %96 : vector<1x32xf32> to vector<8x32xf32>
    %132 = arith.addf %130, %131 : vector<8x32xf32>
    %133 = arith.addf %90, %132 : vector<8x32xf32>
    %c0_60 = arith.constant 0 : index
    %c0_61 = arith.constant 0 : index
    %c0_62 = arith.constant 0 : index
    %134 = vector.load %arg16[%c0_60, %c0_61, %c0_62] : memref<1x8x32xf32, #tpu.memory_space<vmem>>, vector<1x8x32xf32>
    %135 = vector.shape_cast %134 : vector<1x8x32xf32> to vector<8x32xf32>
    %136 = vector.shape_cast %133 : vector<8x32xf32> to vector<1x8x32xf32>
    tpu.vector_store %arg16[%c0_60, %c0_61, %c0_62], %136 {strides = array<i32>} : memref<1x8x32xf32, #tpu.memory_space<vmem>>, vector<1x8x32xf32>,
    return
  }
  func.func @transform_0(%arg0: i32) -> (i32, i32, i32) {
    %c0_i32 = arith.constant 0 : i32
    %c0_i32_0 = arith.constant 0 : i32
    %c0_i32_1 = arith.constant 0 : i32
    return %arg0, %c0_i32, %c0_i32_0 : i32, i32, i32
  }
  func.func @transform_1(%arg0: i32) -> (i32, i32, i32) {
    %c0_i32 = arith.constant 0 : i32
    %c0_i32_0 = arith.constant 0 : i32
    %c0_i32_1 = arith.constant 0 : i32
    return %arg0, %c0_i32, %c0_i32_0 : i32, i32, i32
  }
  func.func @transform_2(%arg0: i32) -> (i32, i32) {
    %c0_i32 = arith.constant 0 : i32
    %c0_i32_0 = arith.constant 0 : i32
    %c0_i32_1 = arith.constant 0 : i32
    return %c0_i32, %c0_i32_0 : i32, i32
  }
  func.func @transform_3(%arg0: i32) -> (i32, i32) {
    %c0_i32 = arith.constant 0 : i32
    %c0_i32_0 = arith.constant 0 : i32
    %c0_i32_1 = arith.constant 0 : i32
    return %c0_i32, %c0_i32_0 : i32, i32
  }
  func.func @transform_4(%arg0: i32) -> (i32, i32) {
    %c0_i32 = arith.constant 0 : i32
    %c0_i32_0 = arith.constant 0 : i32
    %c0_i32_1 = arith.constant 0 : i32
    return %c0_i32, %c0_i32_0 : i32, i32
  }
  func.func @transform_5(%arg0: i32) -> (i32, i32) {
    %c0_i32 = arith.constant 0 : i32
    %c0_i32_0 = arith.constant 0 : i32
    %c0_i32_1 = arith.constant 0 : i32
    return %c0_i32, %c0_i32_0 : i32, i32
  }
  func.func @transform_6(%arg0: i32) -> (i32, i32) {
    %c0_i32 = arith.constant 0 : i32
    %c0_i32_0 = arith.constant 0 : i32
    %c0_i32_1 = arith.constant 0 : i32
    return %c0_i32, %c0_i32_0 : i32, i32
  }
  func.func @transform_7(%arg0: i32) -> (i32, i32) {
    %c0_i32 = arith.constant 0 : i32
    %c0_i32_0 = arith.constant 0 : i32
    %c0_i32_1 = arith.constant 0 : i32
    return %c0_i32, %c0_i32_0 : i32, i32
  }
  func.func @transform_8(%arg0: i32) -> (i32, i32, i32) {
    %c0_i32 = arith.constant 0 : i32
    %c0_i32_0 = arith.constant 0 : i32
    %c0_i32_1 = arith.constant 0 : i32
    %c0_i32_2 = arith.constant 0 : i32
    return %c0_i32, %c0_i32_0, %c0_i32_1 : i32, i32, i32
  }
  func.func @transform_9(%arg0: i32) -> (i32, i32) {
    %c0_i32 = arith.constant 0 : i32
    %c0_i32_0 = arith.constant 0 : i32
    %c0_i32_1 = arith.constant 0 : i32
    return %c0_i32, %c0_i32_0 : i32, i32
  }
  func.func @transform_10(%arg0: i32) -> (i32, i32) {
    %c0_i32 = arith.constant 0 : i32
    %c0_i32_0 = arith.constant 0 : i32
    %c0_i32_1 = arith.constant 0 : i32
    return %c0_i32, %c0_i32_0 : i32, i32
  }
  func.func @transform_11(%arg0: i32) -> (i32, i32) {
    %c0_i32 = arith.constant 0 : i32
    %c0_i32_0 = arith.constant 0 : i32
    %c0_i32_1 = arith.constant 0 : i32
    return %c0_i32, %c0_i32_0 : i32, i32
  }
  func.func @transform_12(%arg0: i32) -> (i32, i32) {
    %c0_i32 = arith.constant 0 : i32
    %c0_i32_0 = arith.constant 0 : i32
    %c0_i32_1 = arith.constant 0 : i32
    return %c0_i32, %c0_i32_0 : i32, i32
  }
  func.func @transform_13(%arg0: i32) -> (i32, i32) {
    %c0_i32 = arith.constant 0 : i32
    %c0_i32_0 = arith.constant 0 : i32
    %c0_i32_1 = arith.constant 0 : i32
    return %c0_i32, %c0_i32_0 : i32, i32
  }
  func.func @transform_14(%arg0: i32) -> (i32, i32) {
    %c0_i32 = arith.constant 0 : i32
    %c0_i32_0 = arith.constant 0 : i32
    %c0_i32_1 = arith.constant 0 : i32
    return %c0_i32, %c0_i32_0 : i32, i32
  }
  func.func @transform_15(%arg0: i32) -> (i32, i32, i32) {
    %c0_i32 = arith.constant 0 : i32
    %c0_i32_0 = arith.constant 0 : i32
    %c0_i32_1 = arith.constant 0 : i32
    return %arg0, %c0_i32, %c0_i32_0 : i32, i32, i32
  }
}

</mosaic_0001>

<llo_original>
// kernel: tpu_custom_call.1
$region0: #{tpu_custom_call.1}
  #allocation0 [shape = 'u32[]', space=smem, size = 0x4, offset = 0x4, fixed_abs, tag = 'smem constant byte address 0x4 - core index']
  #allocation1 [shape = 'u32[72,128]{1,0:T(1,128)}', space=vmem, size = 0x9000, scoped, tag = 'internal scratch']
  %s0 = inlined_call_operand.vmem [shape: f32[2,8,32], index: 0, kind: input, shape index: {}]
  %s1 = inlined_call_operand.vmem [shape: f32[2,16,16], index: 1, kind: input, shape index: {}]
  %s2 = inlined_call_operand.vmem [shape: f32[1,32], index: 2, kind: input, shape index: {}]
  %s3 = inlined_call_operand.hbm [shape: f32[1,32], index: 3, kind: input, shape index: {}]
  %s4 = inlined_call_operand.vmem [shape: f32[1,16], index: 4, kind: input, shape index: {}]
  %s5 = inlined_call_operand.vmem [shape: f32[1,16], index: 5, kind: input, shape index: {}]
  %s6 = inlined_call_operand.vmem [shape: f32[32,32], index: 6, kind: input, shape index: {}]
  %s7 = inlined_call_operand.vmem [shape: f32[16,64], index: 7, kind: input, shape index: {}]
  %s8 = inlined_call_operand.vmem [shape: f32[2,16,32], index: 8, kind: input, shape index: {}]
  %s9 = inlined_call_operand.vmem [shape: f32[1,32], index: 9, kind: input, shape index: {}]
  %s10 = inlined_call_operand.vmem [shape: f32[1,32], index: 10, kind: input, shape index: {}]
  %s11 = inlined_call_operand.vmem [shape: f32[32,128], index: 11, kind: input, shape index: {}]
  %s12 = inlined_call_operand.vmem [shape: f32[1,128], index: 12, kind: input, shape index: {}]
  %s13 = inlined_call_operand.vmem [shape: f32[128,32], index: 13, kind: input, shape index: {}]
  %s14 = inlined_call_operand.vmem [shape: f32[1,32], index: 14, kind: input, shape index: {}]
  %s15 = inlined_call_operand.hbm [shape: f32[2,8,32], index: 15, kind: output, shape index: {}]
  %s16 = sld [smem:[#allocation0]]
  $region97: #{tpu_custom_call.1} parent=0
    _
  %s18 = ssub.s32 1, %s16
  %s19 = scalar_select 0, %s18, %s16
  $region1: #{tpu_custom_call.1} parent=0
    #allocation2 [shape = 'u8[512]{0}', space=vmem, size = 0x400, scoped, tag = 'input window, operand 3, single buffered']
    #allocation3 [shape = 's32[2]{0}', space=sflag, size = 0x8, scoped, tag = 'scoped memory for tpu_custom_call.1']
    #allocation4 [shape = 's32[2]{0}', space=sflag, size = 0x8, scoped, tag = 'scoped memory for tpu_custom_call.1']
    #allocation5 [shape = 'u8[8192]{0}', space=vmem, size = 0x2000, scoped, tag = 'output window, operand 0']
    %20 = vsyncpa [#allocation3], 0
    %21 = vsyncpa [#allocation4], 0
    %s22 = scalar_lea.sflag [#allocation4], 1
    %23 = vsyncpa %s22, 0
    loop: start=0, step=1, limit=4
    $region2: #{tpu_custom_call.1} parent=1 // loop_pre_header
      _
    $region3: #{tpu_custom_call.1} parent=1 // loop_header
      %s25 = sphi 0, %s29
      %p26 = scmp.ge.s32.totalorder %s25, 4
      %s35 = sphi 0, %s37
      %s38 = sphi 0, %s35
      %s39 = sphi 0, %s38
      %s55 = sphi 0, %s39
      %s61 = sphi 0, %s63
      %s64 = sphi 0, %s61
      %s65 = sphi 0, %s64
      %s81 = sphi 0, %s65
      %s85 = sphi 0, %s85
      %s87 = sphi 0, %s85
      %s88 = sphi 0, %s87
      %s102 = sphi 0, %s88
      %s106 = sphi 0, %s106
      %s108 = sphi 0, %s106
      %s109 = sphi 0, %s108
      %s123 = sphi 0, %s109
      %s127 = sphi 0, %s127
      %s129 = sphi 0, %s127
      %s130 = sphi 0, %s129
      %s144 = sphi 0, %s130
      %s148 = sphi 0, %s148
      %s150 = sphi 0, %s148
      %s151 = sphi 0, %s150
      %s165 = sphi 0, %s151
      %s169 = sphi 0, %s169
      %s171 = sphi 0, %s169
      %s172 = sphi 0, %s171
      %s186 = sphi 0, %s172
      %s190 = sphi 0, %s190
      %s192 = sphi 0, %s190
      %s193 = sphi 0, %s192
      %s207 = sphi 0, %s193
      %s211 = sphi 0, %s211
      %s213 = sphi 0, %s211
      %s214 = sphi 0, %s213
      %s228 = sphi 0, %s214
      %s232 = sphi 0, %s232
      %s234 = sphi 0, %s232
      %s235 = sphi 0, %s234
      %s249 = sphi 0, %s235
      %s253 = sphi 0, %s253
      %s255 = sphi 0, %s253
      %s256 = sphi 0, %s255
      %s270 = sphi 0, %s256
      %s274 = sphi 0, %s274
      %s276 = sphi 0, %s274
      %s277 = sphi 0, %s276
      %s291 = sphi 0, %s277
      %s295 = sphi 0, %s295
      %s297 = sphi 0, %s295
      %s298 = sphi 0, %s297
      %s312 = sphi 0, %s298
      %s316 = sphi 0, %s316
      %s318 = sphi 0, %s316
      %s319 = sphi 0, %s318
      %s333 = sphi 0, %s319
      %s337 = sphi 0, %s337
      %s339 = sphi 0, %s337
      %s340 = sphi 0, %s339
      %s354 = sphi 0, %s340
      %s360 = sphi 0, %s362
      %s363 = sphi 0, %s360
      %s364 = sphi 0, %s363
      %s380 = sphi 0, %s364
    $region4: #{tpu_custom_call.1} parent=1 // loop_header_branch
      %28 = sbr.rel (%p26) target = $region8
    $region5: #{tpu_custom_call.1} parent=1 // loop_body
      %s30 = ssub.s32 %s25, 1
      %s31 = ssub.s32 %s25, 2
      %s32 = sadd.s32 %s25, 1
      %s33 = ssub.s32 %s25, %s32
      %p34 = scmp.eq.s32.totalorder %s33, 0
      %s36 = sadd.s32 %s35, 1
      %s37 = scalar_select %p34, %s35, %s36
      %p40 = pneg %p34
      %p41 = scmp.eq.s32.totalorder %s25, 1
      %p42 = por %p40, %p41
      %p43 = scmp.ne.s32.totalorder %s35, %s38
      %p44 = scmp.eq.s32.totalorder %s25, 0
      %p45 = por %p43, %p44
      %p46 = scmp.ne.s32.totalorder %s35, %s38
      %p47 = scmp.eq.s32.totalorder %s30, 1
      %p48 = por %p46, %p47
      %p49 = scmp.ne.s32.totalorder %s38, %s39
      %p50 = scmp.eq.s32.totalorder %s30, 0
      %p51 = por %p49, %p50
      %p52 = scmp.ne.s32.totalorder %s38, %s39
      %p53 = scmp.eq.s32.totalorder %s31, 1
      %p54 = por %p52, %p53
      %p56 = scmp.ne.s32.totalorder %s39, %s55
      %p57 = scmp.eq.s32.totalorder %s31, 0
      %p58 = por %p56, %p57
      %s59 = ssub.s32 %s25, %s32
      %p60 = scmp.eq.s32.totalorder %s59, 0
      %s62 = sadd.s32 %s61, 1
      %s63 = scalar_select %p60, %s61, %s62
      %p66 = pneg %p60
      %p67 = scmp.eq.s32.totalorder %s25, 1
      %p68 = por %p66, %p67
      %p69 = scmp.ne.s32.totalorder %s61, %s64
      %p70 = scmp.eq.s32.totalorder %s25, 0
      %p71 = por %p69, %p70
      %p72 = scmp.ne.s32.totalorder %s61, %s64
      %p73 = scmp.eq.s32.totalorder %s30, 1
      %p74 = por %p72, %p73
      %p75 = scmp.ne.s32.totalorder %s64, %s65
      %p76 = scmp.eq.s32.totalorder %s30, 0
      %p77 = por %p75, %p76
      %p78 = scmp.ne.s32.totalorder %s64, %s65
      %p79 = scmp.eq.s32.totalorder %s31, 1
      %p80 = por %p78, %p79
      %p82 = scmp.ne.s32.totalorder %s65, %s81
      %p83 = scmp.eq.s32.totalorder %s31, 0
      %p84 = por %p82, %p83
      %s86 = sadd.s32 %s85, 1
      %p89 = scmp.eq.s32.totalorder %s25, 1
      %p90 = scmp.ne.s32.totalorder %s85, %s87
      %p91 = scmp.eq.s32.totalorder %s25, 0
      %p92 = por %p90, %p91
      %p93 = scmp.ne.s32.totalorder %s85, %s87
      %p94 = scmp.eq.s32.totalorder %s30, 1
      %p95 = por %p93, %p94
      %p96 = scmp.ne.s32.totalorder %s87, %s88
      %p97 = scmp.eq.s32.totalorder %s30, 0
      %p98 = por %p96, %p97
      %p99 = scmp.ne.s32.totalorder %s87, %s88
      %p100 = scmp.eq.s32.totalorder %s31, 1
      %p101 = por %p99, %p100
      %p103 = scmp.ne.s32.totalorder %s88, %s102
      %p104 = scmp.eq.s32.totalorder %s31, 0
      %p105 = por %p103, %p104
      %s107 = sadd.s32 %s106, 1
      %p110 = scmp.eq.s32.totalorder %s25, 1
      %p111 = scmp.ne.s32.totalorder %s106, %s108
      %p112 = scmp.eq.s32.totalorder %s25, 0
      %p113 = por %p111, %p112
      %p114 = scmp.ne.s32.totalorder %s106, %s108
      %p115 = scmp.eq.s32.totalorder %s30, 1
      %p116 = por %p114, %p115
      %p117 = scmp.ne.s32.totalorder %s108, %s109
      %p118 = scmp.eq.s32.totalorder %s30, 0
      %p119 = por %p117, %p118
      %p120 = scmp.ne.s32.totalorder %s108, %s109
      %p121 = scmp.eq.s32.totalorder %s31, 1
      %p122 = por %p120, %p121
      %p124 = scmp.ne.s32.totalorder %s109, %s123
      %p125 = scmp.eq.s32.totalorder %s31, 0
      %p126 = por %p124, %p125
      %s128 = sadd.s32 %s127, 1
      %p131 = scmp.eq.s32.totalorder %s25, 1
      %p132 = scmp.ne.s32.totalorder %s127, %s129
      %p133 = scmp.eq.s32.totalorder %s25, 0
      %p134 = por %p132, %p133
      %p135 = scmp.ne.s32.totalorder %s127, %s129
      %p136 = scmp.eq.s32.totalorder %s30, 1
      %p137 = por %p135, %p136
      %p138 = scmp.ne.s32.totalorder %s129, %s130
      %p139 = scmp.eq.s32.totalorder %s30, 0
      %p140 = por %p138, %p139
      %p141 = scmp.ne.s32.totalorder %s129, %s130
      %p142 = scmp.eq.s32.totalorder %s31, 1
      %p143 = por %p141, %p142
      %p145 = scmp.ne.s32.totalorder %s130, %s144
      %p146 = scmp.eq.s32.totalorder %s31, 0
      %p147 = por %p145, %p146
      %s149 = sadd.s32 %s148, 1
      %p152 = scmp.eq.s32.totalorder %s25, 1
      %p153 = scmp.ne.s32.totalorder %s148, %s150
      %p154 = scmp.eq.s32.totalorder %s25, 0
      %p155 = por %p153, %p154
      %p156 = scmp.ne.s32.totalorder %s148, %s150
      %p157 = scmp.eq.s32.totalorder %s30, 1
      %p158 = por %p156, %p157
      %p159 = scmp.ne.s32.totalorder %s150, %s151
      %p160 = scmp.eq.s32.totalorder %s30, 0
      %p161 = por %p159, %p160
      %p162 = scmp.ne.s32.totalorder %s150, %s151
      %p163 = scmp.eq.s32.totalorder %s31, 1
      %p164 = por %p162, %p163
      %p166 = scmp.ne.s32.totalorder %s151, %s165
      %p167 = scmp.eq.s32.totalorder %s31, 0
      %p168 = por %p166, %p167
      %s170 = sadd.s32 %s169, 1
      %p173 = scmp.eq.s32.totalorder %s25, 1
      %p174 = scmp.ne.s32.totalorder %s169, %s171
      %p175 = scmp.eq.s32.totalorder %s25, 0
      %p176 = por %p174, %p175
      %p177 = scmp.ne.s32.totalorder %s169, %s171
      %p178 = scmp.eq.s32.totalorder %s30, 1
      %p179 = por %p177, %p178
      %p180 = scmp.ne.s32.totalorder %s171, %s172
      %p181 = scmp.eq.s32.totalorder %s30, 0
      %p182 = por %p180, %p181
      %p183 = scmp.ne.s32.totalorder %s171, %s172
      %p184 = scmp.eq.s32.totalorder %s31, 1
      %p185 = por %p183, %p184
      %p187 = scmp.ne.s32.totalorder %s172, %s186
      %p188 = scmp.eq.s32.totalorder %s31, 0
      %p189 = por %p187, %p188
      %s191 = sadd.s32 %s190, 1
      %p194 = scmp.eq.s32.totalorder %s25, 1
      %p195 = scmp.ne.s32.totalorder %s190, %s192
      %p196 = scmp.eq.s32.totalorder %s25, 0
      %p197 = por %p195, %p196
      %p198 = scmp.ne.s32.totalorder %s190, %s192
      %p199 = scmp.eq.s32.totalorder %s30, 1
      %p200 = por %p198, %p199
      %p201 = scmp.ne.s32.totalorder %s192, %s193
      %p202 = scmp.eq.s32.totalorder %s30, 0
      %p203 = por %p201, %p202
      %p204 = scmp.ne.s32.totalorder %s192, %s193
      %p205 = scmp.eq.s32.totalorder %s31, 1
      %p206 = por %p204, %p205
      %p208 = scmp.ne.s32.totalorder %s193, %s207
      %p209 = scmp.eq.s32.totalorder %s31, 0
      %p210 = por %p208, %p209
      %s212 = sadd.s32 %s211, 1
      %p215 = scmp.eq.s32.totalorder %s25, 1
      %p216 = scmp.ne.s32.totalorder %s211, %s213
      %p217 = scmp.eq.s32.totalorder %s25, 0
      %p218 = por %p216, %p217
      %p219 = scmp.ne.s32.totalorder %s211, %s213
      %p220 = scmp.eq.s32.totalorder %s30, 1
      %p221 = por %p219, %p220
      %p222 = scmp.ne.s32.totalorder %s213, %s214
      %p223 = scmp.eq.s32.totalorder %s30, 0
      %p224 = por %p222, %p223
      %p225 = scmp.ne.s32.totalorder %s213, %s214
      %p226 = scmp.eq.s32.totalorder %s31, 1
      %p227 = por %p225, %p226
      %p229 = scmp.ne.s32.totalorder %s214, %s228
      %p230 = scmp.eq.s32.totalorder %s31, 0
      %p231 = por %p229, %p230
      %s233 = sadd.s32 %s232, 1
      %p236 = scmp.eq.s32.totalorder %s25, 1
      %p237 = scmp.ne.s32.totalorder %s232, %s234
      %p238 = scmp.eq.s32.totalorder %s25, 0
      %p239 = por %p237, %p238
      %p240 = scmp.ne.s32.totalorder %s232, %s234
      %p241 = scmp.eq.s32.totalorder %s30, 1
      %p242 = por %p240, %p241
      %p243 = scmp.ne.s32.totalorder %s234, %s235
      %p244 = scmp.eq.s32.totalorder %s30, 0
      %p245 = por %p243, %p244
      %p246 = scmp.ne.s32.totalorder %s234, %s235
      %p247 = scmp.eq.s32.totalorder %s31, 1
      %p248 = por %p246, %p247
      %p250 = scmp.ne.s32.totalorder %s235, %s249
      %p251 = scmp.eq.s32.totalorder %s31, 0
      %p252 = por %p250, %p251
      %s254 = sadd.s32 %s253, 1
      %p257 = scmp.eq.s32.totalorder %s25, 1
      %p258 = scmp.ne.s32.totalorder %s253, %s255
      %p259 = scmp.eq.s32.totalorder %s25, 0
      %p260 = por %p258, %p259
      %p261 = scmp.ne.s32.totalorder %s253, %s255
      %p262 = scmp.eq.s32.totalorder %s30, 1
      %p263 = por %p261, %p262
      %p264 = scmp.ne.s32.totalorder %s255, %s256
      %p265 = scmp.eq.s32.totalorder %s30, 0
      %p266 = por %p264, %p265
      %p267 = scmp.ne.s32.totalorder %s255, %s256
      %p268 = scmp.eq.s32.totalorder %s31, 1
      %p269 = por %p267, %p268
      %p271 = scmp.ne.s32.totalorder %s256, %s270
      %p272 = scmp.eq.s32.totalorder %s31, 0
      %p273 = por %p271, %p272
      %s275 = sadd.s32 %s274, 1
      %p278 = scmp.eq.s32.totalorder %s25, 1
      %p279 = scmp.ne.s32.totalorder %s274, %s276
      %p280 = scmp.eq.s32.totalorder %s25, 0
      %p281 = por %p279, %p280
      %p282 = scmp.ne.s32.totalorder %s274, %s276
      %p283 = scmp.eq.s32.totalorder %s30, 1
      %p284 = por %p282, %p283
      %p285 = scmp.ne.s32.totalorder %s276, %s277
      %p286 = scmp.eq.s32.totalorder %s30, 0
      %p287 = por %p285, %p286
      %p288 = scmp.ne.s32.totalorder %s276, %s277
      %p289 = scmp.eq.s32.totalorder %s31, 1
      %p290 = por %p288, %p289
      %p292 = scmp.ne.s32.totalorder %s277, %s291
      %p293 = scmp.eq.s32.totalorder %s31, 0
      %p294 = por %p292, %p293
      %s296 = sadd.s32 %s295, 1
      %p299 = scmp.eq.s32.totalorder %s25, 1
      %p300 = scmp.ne.s32.totalorder %s295, %s297
      %p301 = scmp.eq.s32.totalorder %s25, 0
      %p302 = por %p300, %p301
      %p303 = scmp.ne.s32.totalorder %s295, %s297
      %p304 = scmp.eq.s32.totalorder %s30, 1
      %p305 = por %p303, %p304
      %p306 = scmp.ne.s32.totalorder %s297, %s298
      %p307 = scmp.eq.s32.totalorder %s30, 0
      %p308 = por %p306, %p307
      %p309 = scmp.ne.s32.totalorder %s297, %s298
      %p310 = scmp.eq.s32.totalorder %s31, 1
      %p311 = por %p309, %p310
      %p313 = scmp.ne.s32.totalorder %s298, %s312
      %p314 = scmp.eq.s32.totalorder %s31, 0
      %p315 = por %p313, %p314
      %s317 = sadd.s32 %s316, 1
      %p320 = scmp.eq.s32.totalorder %s25, 1
      %p321 = scmp.ne.s32.totalorder %s316, %s318
      %p322 = scmp.eq.s32.totalorder %s25, 0
      %p323 = por %p321, %p322
      %p324 = scmp.ne.s32.totalorder %s316, %s318
      %p325 = scmp.eq.s32.totalorder %s30, 1
      %p326 = por %p324, %p325
      %p327 = scmp.ne.s32.totalorder %s318, %s319
      %p328 = scmp.eq.s32.totalorder %s30, 0
      %p329 = por %p327, %p328
      %p330 = scmp.ne.s32.totalorder %s318, %s319
      %p331 = scmp.eq.s32.totalorder %s31, 1
      %p332 = por %p330, %p331
      %p334 = scmp.ne.s32.totalorder %s319, %s333
      %p335 = scmp.eq.s32.totalorder %s31, 0
      %p336 = por %p334, %p335
      %s338 = sadd.s32 %s337, 1
      %p341 = scmp.eq.s32.totalorder %s25, 1
      %p342 = scmp.ne.s32.totalorder %s337, %s339
      %p343 = scmp.eq.s32.totalorder %s25, 0
      %p344 = por %p342, %p343
      %p345 = scmp.ne.s32.totalorder %s337, %s339
      %p346 = scmp.eq.s32.totalorder %s30, 1
      %p347 = por %p345, %p346
      %p348 = scmp.ne.s32.totalorder %s339, %s340
      %p349 = scmp.eq.s32.totalorder %s30, 0
      %p350 = por %p348, %p349
      %p351 = scmp.ne.s32.totalorder %s339, %s340
      %p352 = scmp.eq.s32.totalorder %s31, 1
      %p353 = por %p351, %p352
      %p355 = scmp.ne.s32.totalorder %s340, %s354
      %p356 = scmp.eq.s32.totalorder %s31, 0
      %p357 = por %p355, %p356
      %s358 = ssub.s32 %s25, %s32
      %p359 = scmp.eq.s32.totalorder %s358, 0
      %s361 = sadd.s32 %s360, 1
      %s362 = scalar_select %p359, %s360, %s361
      %p365 = pneg %p359
      %p366 = scmp.eq.s32.totalorder %s25, 1
      %p367 = por %p365, %p366
      %p368 = scmp.ne.s32.totalorder %s360, %s363
      %p369 = scmp.eq.s32.totalorder %s25, 0
      %p370 = por %p368, %p369
      %p371 = scmp.ne.s32.totalorder %s360, %s363
      %p372 = scmp.eq.s32.totalorder %s30, 1
      %p373 = por %p371, %p372
      %p374 = scmp.ne.s32.totalorder %s363, %s364
      %p375 = scmp.eq.s32.totalorder %s30, 0
      %p376 = por %p374, %p375
      %p377 = scmp.ne.s32.totalorder %s363, %s364
      %p378 = scmp.eq.s32.totalorder %s31, 1
      %p379 = por %p377, %p378
      %p381 = scmp.ne.s32.totalorder %s364, %s380
      %p382 = scmp.eq.s32.totalorder %s31, 0
      %p383 = por %p381, %p382
      %p384 = scmp.le.s32.totalorder 1, %s25
      %p385 = scmp.lt.s32.totalorder %s25, 3
      %p386 = pnand %p384, %p385
      %p387 = pneg %p386
      // Predicated region
      $region9: #{tpu_custom_call.1} parent=5 // pred_check
        _
      $region10: #{tpu_custom_call.1} parent=5 // pred_check_branch
        %389 = sbr.rel (%p386) target = $region12
      $region11: #{tpu_custom_call.1} parent=5 // pred_region
        %s390 = ssub.s32 %s25, 1
        // Predicated region
        $region13: #{tpu_custom_call.1} parent=11 // pred_check
          %p391 = pneg %p98
        $region14: #{tpu_custom_call.1} parent=11 // pred_check_branch
          %393 = sbr.rel (%p391) target = $region16
        $region15: #{tpu_custom_call.1} parent=11 // pred_region
          _
        $region16: #{tpu_custom_call.1} parent=11 // pred_fallthru
          _
        // Predicated region
        $region17: #{tpu_custom_call.1} parent=11 // pred_check
          %p394 = pneg %p119
        $region18: #{tpu_custom_call.1} parent=11 // pred_check_branch
          %396 = sbr.rel (%p394) target = $region20
        $region19: #{tpu_custom_call.1} parent=11 // pred_region
          %398 = vsyncadd [#allocation3], 0
          %s400 = sshll.u32 %s3, 4
          %s401 = int_to_ptr.hbm [resolvable:$true] %s400
          %s402 = sshll.u32 [#allocation2], 4
          %s403 = int_to_ptr.vmem [resolvable:$true] %s402
          %405 = dma.hbm_to_vmem [thread:$0]  %s401, 16, %s403, [#allocation3]
        $region20: #{tpu_custom_call.1} parent=11 // pred_fallthru
          _
        // Predicated region
        $region21: #{tpu_custom_call.1} parent=11 // pred_check
          %p406 = pneg %p140
        $region22: #{tpu_custom_call.1} parent=11 // pred_check_branch
          %408 = sbr.rel (%p406) target = $region24
        $region23: #{tpu_custom_call.1} parent=11 // pred_region
          _
        $region24: #{tpu_custom_call.1} parent=11 // pred_fallthru
          _
        // Predicated region
        $region25: #{tpu_custom_call.1} parent=11 // pred_check
          %p409 = pneg %p161
        $region26: #{tpu_custom_call.1} parent=11 // pred_check_branch
          %411 = sbr.rel (%p409) target = $region28
        $region27: #{tpu_custom_call.1} parent=11 // pred_region
          _
        $region28: #{tpu_custom_call.1} parent=11 // pred_fallthru
          _
        // Predicated region
        $region29: #{tpu_custom_call.1} parent=11 // pred_check
          %p412 = pneg %p182
        $region30: #{tpu_custom_call.1} parent=11 // pred_check_branch
          %414 = sbr.rel (%p412) target = $region32
        $region31: #{tpu_custom_call.1} parent=11 // pred_region
          _
        $region32: #{tpu_custom_call.1} parent=11 // pred_fallthru
          _
        // Predicated region
        $region33: #{tpu_custom_call.1} parent=11 // pred_check
          %p415 = pneg %p203
        $region34: #{tpu_custom_call.1} parent=11 // pred_check_branch
          %417 = sbr.rel (%p415) target = $region36
        $region35: #{tpu_custom_call.1} parent=11 // pred_region
          _
        $region36: #{tpu_custom_call.1} parent=11 // pred_fallthru
          _
        // Predicated region
        $region37: #{tpu_custom_call.1} parent=11 // pred_check
          %p418 = pneg %p224
        $region38: #{tpu_custom_call.1} parent=11 // pred_check_branch
          %420 = sbr.rel (%p418) target = $region40
        $region39: #{tpu_custom_call.1} parent=11 // pred_region
          _
        $region40: #{tpu_custom_call.1} parent=11 // pred_fallthru
          _
        // Predicated region
        $region41: #{tpu_custom_call.1} parent=11 // pred_check
          %p421 = pneg %p245
        $region42: #{tpu_custom_call.1} parent=11 // pred_check_branch
          %423 = sbr.rel (%p421) target = $region44
        $region43: #{tpu_custom_call.1} parent=11 // pred_region
          _
        $region44: #{tpu_custom_call.1} parent=11 // pred_fallthru
          _
        // Predicated region
        $region45: #{tpu_custom_call.1} parent=11 // pred_check
          %p424 = pneg %p266
        $region46: #{tpu_custom_call.1} parent=11 // pred_check_branch
          %426 = sbr.rel (%p424) target = $region48
        $region47: #{tpu_custom_call.1} parent=11 // pred_region
          _
        $region48: #{tpu_custom_call.1} parent=11 // pred_fallthru
          _
        // Predicated region
        $region49: #{tpu_custom_call.1} parent=11 // pred_check
          %p427 = pneg %p287
        $region50: #{tpu_custom_call.1} parent=11 // pred_check_branch
          %429 = sbr.rel (%p427) target = $region52
        $region51: #{tpu_custom_call.1} parent=11 // pred_region
          _
        $region52: #{tpu_custom_call.1} parent=11 // pred_fallthru
          _
        // Predicated region
        $region53: #{tpu_custom_call.1} parent=11 // pred_check
          %p430 = pneg %p308
        $region54: #{tpu_custom_call.1} parent=11 // pred_check_branch
          %432 = sbr.rel (%p430) target = $region56
        $region55: #{tpu_custom_call.1} parent=11 // pred_region
          _
        $region56: #{tpu_custom_call.1} parent=11 // pred_fallthru
          _
        // Predicated region
        $region57: #{tpu_custom_call.1} parent=11 // pred_check
          %p433 = pneg %p329
        $region58: #{tpu_custom_call.1} parent=11 // pred_check_branch
          %435 = sbr.rel (%p433) target = $region60
        $region59: #{tpu_custom_call.1} parent=11 // pred_region
          _
        $region60: #{tpu_custom_call.1} parent=11 // pred_fallthru
          _
        // Predicated region
        $region61: #{tpu_custom_call.1} parent=11 // pred_check
          %p436 = pneg %p350
        $region62: #{tpu_custom_call.1} parent=11 // pred_check_branch
          %438 = sbr.rel (%p436) target = $region64
        $region63: #{tpu_custom_call.1} parent=11 // pred_region
          _
        $region64: #{tpu_custom_call.1} parent=11 // pred_fallthru
          _
      $region12: #{tpu_custom_call.1} parent=5 // pred_fallthru
        _
      %p439 = scmp.lt.s32.totalorder %s25, 2
      // Predicated region
      $region65: #{tpu_custom_call.1} parent=5 // pred_check
        %p440 = pneg %p439
      $region66: #{tpu_custom_call.1} parent=5 // pred_check_branch
        %442 = sbr.rel (%p440) target = $region68
      $region67: #{tpu_custom_call.1} parent=5 // pred_region
        // Predicated region
        $region69: #{tpu_custom_call.1} parent=67 // pred_check
          %p443 = pneg %p45
        $region70: #{tpu_custom_call.1} parent=67 // pred_check_branch
          %445 = sbr.rel (%p443) target = $region72
        $region71: #{tpu_custom_call.1} parent=67 // pred_region
          %p446 = scmp.lt.s32.totalorder %s25, 1
          %s447 = scalar_select %p446, %s25, 1
          %s448 = smul.addr %s447, 8
          %s449 = scalar_lea.vmem %s0, %s448
        $region72: #{tpu_custom_call.1} parent=67 // pred_fallthru
          _
        // Predicated region
        $region73: #{tpu_custom_call.1} parent=67 // pred_check
          %p450 = pneg %p71
        $region74: #{tpu_custom_call.1} parent=67 // pred_check_branch
          %452 = sbr.rel (%p450) target = $region76
        $region75: #{tpu_custom_call.1} parent=67 // pred_region
          %p453 = scmp.lt.s32.totalorder %s25, 1
          %s454 = scalar_select %p453, %s25, 1
          %s455 = smul.addr %s454, 2
          %s456 = smul.addr %s455, 8
          %s457 = scalar_lea.vmem %s1, %s456
        $region76: #{tpu_custom_call.1} parent=67 // pred_fallthru
          _
      $region68: #{tpu_custom_call.1} parent=5 // pred_fallthru
        _
      %p458 = scmp.le.s32.totalorder 1, %s25
      %p459 = scmp.lt.s32.totalorder %s25, 3
      %p460 = pnand %p458, %p459
      %p461 = pneg %p460
      // Predicated region
      $region77: #{tpu_custom_call.1} parent=5 // pred_check
        _
      $region78: #{tpu_custom_call.1} parent=5 // pred_check_branch
        %463 = sbr.rel (%p460) target = $region80
      $region79: #{tpu_custom_call.1} parent=5 // pred_region
        %s464 = ssub.s32 %s25, 1
        // Predicated region
        $region81: #{tpu_custom_call.1} parent=79 // pred_check
          %p465 = pneg %p119
        $region82: #{tpu_custom_call.1} parent=79 // pred_check_branch
          %467 = sbr.rel (%p465) target = $region84
        $region83: #{tpu_custom_call.1} parent=79 // pred_region
          %469 = dma.done [#allocation3], 16
        $region84: #{tpu_custom_call.1} parent=79 // pred_fallthru
          _
        %p470 = scmp.lt.s32.totalorder %s30, 1
        %s471 = scalar_select %p470, %s30, 1
        %s472 = smul.addr %s471, 8
        %s473 = scalar_lea.vmem %s0, %s472
        %p474 = pneg %p51
        %p475 = pneg %p48
        %p476 = scmp.lt.s32.totalorder %s30, 1
        %s477 = scalar_select %p476, %s30, 1
        %s478 = smul.addr %s477, 2
        %s479 = smul.addr %s478, 8
        %s480 = scalar_lea.vmem %s1, %s479
        %p481 = pneg %p77
        %p482 = pneg %p74
        %p483 = pneg %p98
        %p484 = pneg %p95
        %p485 = pneg %p119
        %p486 = pneg %p116
        %p487 = pneg %p140
        %p488 = pneg %p137
        %p489 = pneg %p161
        %p490 = pneg %p158
        %p491 = pneg %p182
        %p492 = pneg %p179
        %p493 = pneg %p203
        %p494 = pneg %p200
        %p495 = pneg %p224
        %p496 = pneg %p221
        %p497 = pneg %p245
        %p498 = pneg %p242
        %p499 = pneg %p266
        %p500 = pneg %p263
        %p501 = pneg %p287
        %p502 = pneg %p284
        %p503 = pneg %p308
        %p504 = pneg %p305
        %p505 = pneg %p329
        %p506 = pneg %p326
        %p507 = pneg %p350
        %p508 = pneg %p347
        %p509 = pneg %p376
        %p510 = pneg %p373
        %s511 = sand.u32 %s363, 1
        %s512 = scalar_lea.sflag [#allocation4], %s511
        %s513 = sand.u32 %s363, 1
        %s514 = smul.addr %s513, 8
        %s515 = scalar_lea.vmem [#allocation5], %s514
        %p516 = scmp.lt.s32.totalorder %s30, 1
        %s517 = scalar_select %p516, %s30, 1
        %s518 = smul.addr %s517, 8
        %s519 = scalar_lea.vmem %s0, %s518
        %p520 = scmp.lt.s32.totalorder %s30, 1
        %s521 = scalar_select %p520, %s30, 1
        %s522 = smul.addr %s521, 2
        %s523 = smul.addr %s522, 8
        %s524 = scalar_lea.vmem %s1, %s523
        %v525 = vld [vmem:[%s519] sm:$0xff]
        %v526 = vld [vmem:[%s524] sm:$0xff]
        %v527 = vld [vmem:[%s524 + $0x8] sm:$0xff]
        %v528 = vld [vmem:[%s2] sm:$0x1]
        %v529 = vld [vmem:[#allocation2] sm:$0x1]
        %vm530 = vcmask 261120
        %v531 = vsel %vm530, %v525, 0.0
        %532 = vadd.xlane.f32.xlu0 %v531
        %v533 = vpop.xlane.xlu0 %532
        %v534 = vrcp.pop 32.0
        %v535 = vmul.f32 32.0, %v534
        %v536 = vsub.f32 1.0, %v535
        %v537 = vmul.f32 %v534, %v536
        %v538 = vadd.f32 %v534, %v537
        %vm539 = vweird.f32 %v534
        %v540 = vsel %vm539, %v534, %v538
        %v541 = vmul.f32 %v533, %v540
        %v542 = vsub.f32 %v525, %v541
        %v543 = vmul.f32 %v542, %v542
        %v544 = vsel %vm530, %v543, 0.0
        %545 = vadd.xlane.f32.xlu0 %v544
        %v546 = vpop.xlane.xlu0 %545
        %v547 = vmul.f32 %v546, %v540
        %v548 = vadd.f32 %v547, 1e-05
        %v549 = vrsqrt.pop %v548
        %v550 = vmul.f32 %v549, %v548
        %v551 = vmul.f32 %v550, %v549
        %v552 = vmul.f32 0.5, %v551
        %v553 = vsub.f32 1.5, %v552
        %v554 = vmul.f32 %v549, %v553
        %vm555 = vweird.f32 %v548
        %vm556 = vweird.f32 %v549
        %vm557 = vmor %vm555, %vm556
        %v558 = vsel %vm557, %v549, %v554
        %v559 = vmul.f32 %v542, %v558
        %v561 = vperm.slane %v528, 0
        %v563 = vmul.f32 %v559, %v561
        %v565 = vperm.slane %v529, 0
        %v567 = vadd.f32 %v563, %v565
        %v568 = vld [vmem:[%s4] sm:$0x1]
        %v569 = vld [vmem:[%s5] sm:$0x1]
        %vm570 = vcmask 130048
        %v571 = vsel %vm570, %v526, 0.0
        %572 = vadd.xlane.f32.xlu0 %v571
        %v573 = vpop.xlane.xlu0 %572
        %v574 = vsel %vm570, %v527, 0.0
        %575 = vadd.xlane.f32.xlu0 %v574
        %v576 = vpop.xlane.xlu0 %575
        %v577 = vrcp.pop 16.0
        %v578 = vmul.f32 16.0, %v577
        %v579 = vsub.f32 1.0, %v578
        %v580 = vmul.f32 %v577, %v579
        %v581 = vadd.f32 %v577, %v580
        %vm582 = vweird.f32 %v577
        %v583 = vsel %vm582, %v577, %v581
        %v584 = vmul.f32 %v573, %v583
        %v585 = vmul.f32 %v576, %v583
        %v586 = vsub.f32 %v526, %v584
        %v587 = vsub.f32 %v527, %v585
        %v588 = vmul.f32 %v586, %v586
        %v589 = vmul.f32 %v587, %v587
        %v590 = vsel %vm570, %v588, 0.0
        %591 = vadd.xlane.f32.xlu0 %v590
        %v592 = vpop.xlane.xlu0 %591
        %v593 = vsel %vm570, %v589, 0.0
        %594 = vadd.xlane.f32.xlu0 %v593
        %v595 = vpop.xlane.xlu0 %594
        %v596 = vmul.f32 %v592, %v583
        %v597 = vmul.f32 %v595, %v583
        %v598 = vadd.f32 %v596, 1e-05
        %v599 = vadd.f32 %v597, 1e-05
        %v600 = vrsqrt.pop %v598
        %v601 = vmul.f32 %v600, %v598
        %v602 = vmul.f32 %v601, %v600
        %v603 = vmul.f32 0.5, %v602
        %v604 = vsub.f32 1.5, %v603
        %v605 = vmul.f32 %v600, %v604
        %vm606 = vweird.f32 %v598
        %vm607 = vweird.f32 %v600
        %vm608 = vmor %vm606, %vm607
        %v609 = vsel %vm608, %v600, %v605
        %v610 = vrsqrt.pop %v599
        %v611 = vmul.f32 %v610, %v599
        %v612 = vmul.f32 %v611, %v610
        %v613 = vmul.f32 0.5, %v612
        %v614 = vsub.f32 1.5, %v613
        %v615 = vmul.f32 %v610, %v614
        %vm616 = vweird.f32 %v599
        %vm617 = vweird.f32 %v610
        %vm618 = vmor %vm616, %vm617
        %v619 = vsel %vm618, %v610, %v615
        %v620 = vmul.f32 %v586, %v609
        %v621 = vmul.f32 %v587, %v619
        %v623 = vperm.slane %v568, 0
        %v625 = vmul.f32 %v620, %v623
        %v626 = vmul.f32 %v621, %v623
        %v628 = vperm.slane %v569, 0
        %v630 = vadd.f32 %v625, %v628
        %v631 = vadd.f32 %v626, %v628
        %v632 = vld [vmem:[%s6] sm:$0xff]
        %v633 = vld [vmem:[%s6 + $0x8] sm:$0xff]
        %v634 = vld [vmem:[%s6 + $0x10] sm:$0xff]
        %v635 = vld [vmem:[%s6 + $0x18] sm:$0xff]
        %v637 = vsel %vm530, %v567, 0
        %639 = vmatpush.msra.mxu0 0.0
        %640 = vmatpush.msra.mxu0 0.0
        %641 = vmatpush.msra.mxu0 0.0
        %642 = vmatpush.msra.mxu0 0.0
        %643 = vmatpush.msra.mxu0 0.0
        %644 = vmatpush.msra.mxu0 0.0
        %645 = vmatpush.msra.mxu0 0.0
        %646 = vmatpush.msra.mxu0 0.0
        %647 = vmatpush.msra.mxu0 0.0
        %648 = vmatpush.msra.mxu0 0.0
        %649 = vmatpush.msra.mxu0 0.0
        %650 = vmatpush.msra.mxu0 0.0
        %651 = vmatpush.msra.mxu0 %v635
        %652 = vmatpush.msra.mxu0 %v634
        %653 = vmatpush.msra.mxu0 %v633
        %654 = vmatpush.msra.mxu0 %v632
        %655 = vmatmul.f32.gmra.mxu0 %v637
        %v656 = vpop.f32.mrf.mxu0
        %v657 = vadd.f32 0.0, %v656
        %658 = vdwg.mxu0
        %v659 = vmul.f32 %v657, 0.25
        %v660 = vld [vmem:[%s7] sm:$0xff]
        %v661 = vld [vmem:[%s7 + $0x8] sm:$0xff]
        %v663 = vsel %vm570, %v630, 0
        %v666 = vsel %vm570, %v631, 0
        %668 = vmatpush.msra.mxu0 0.0
        %669 = vmatpush.msra.mxu0 0.0
        %670 = vmatpush.msra.mxu0 0.0
        %671 = vmatpush.msra.mxu0 0.0
        %672 = vmatpush.msra.mxu0 0.0
        %673 = vmatpush.msra.mxu0 0.0
        %674 = vmatpush.msra.mxu0 0.0
        %675 = vmatpush.msra.mxu0 0.0
        %676 = vmatpush.msra.mxu0 0.0
        %677 = vmatpush.msra.mxu0 0.0
        %678 = vmatpush.msra.mxu0 0.0
        %679 = vmatpush.msra.mxu0 0.0
        %680 = vmatpush.msra.mxu0 0.0
        %681 = vmatpush.msra.mxu0 0.0
        %682 = vmatpush.msra.mxu0 %v661
        %683 = vmatpush.msra.mxu0 %v660
        %684 = vmatmul.f32.gmra.mxu0 %v663
        %v685 = vpop.f32.mrf.mxu0
        %v686 = vadd.f32 0.0, %v685
        %687 = vmatmul.f32.gmra.mxu0 %v666
        %v688 = vpop.f32.mrf.mxu0
        %v689 = vadd.f32 0.0, %v688
        %690 = vdwg.mxu0
        %692 = vrot.lane.b32.xlu0 %v659, 112
        %v693 = vpop.permute.xlu0 %692
        %696 = vrot.lane.b32.xlu0 %v686, 112
        %v697 = vpop.permute.xlu0 %696
        %698 = vrot.lane.b32.xlu0 %v689, 112
        %v699 = vpop.permute.xlu0 %698
        %v700 = vld [vmem:[%s8] sm:$0xff]
        %v701 = vld [vmem:[%s8 + $0x8] sm:$0xff]
        %v702 = vld [vmem:[%s8 + $0x10] sm:$0xff]
        %v703 = vld [vmem:[%s8 + $0x18] sm:$0xff]
        %v704 = vsel %vm570, %v659, 0
        %v706 = vsel %vm570, %v686, 0
        %v708 = vsel %vm570, %v689, 0
        %710 = vmatpush.xpose.msra.mxu0 0.0
        %711 = vmatpush.xpose.msra.mxu0 0.0
        %712 = vmatpush.xpose.msra.mxu0 0.0
        %713 = vmatpush.xpose.msra.mxu0 0.0
        %714 = vmatpush.xpose.msra.mxu0 0.0
        %715 = vmatpush.xpose.msra.mxu0 0.0
        %716 = vmatpush.xpose.msra.mxu0 0.0
        %717 = vmatpush.xpose.msra.mxu0 0.0
        %718 = vmatpush.xpose.msra.mxu0 0.0
        %719 = vmatpush.xpose.msra.mxu0 0.0
        %720 = vmatpush.xpose.msra.mxu0 0.0
        %721 = vmatpush.xpose.msra.mxu0 0.0
        %722 = vmatpush.xpose.msra.mxu0 0.0
        %723 = vmatpush.xpose.msra.mxu0 0.0
        %724 = vmatpush.xpose.msra.mxu0 %v708
        %725 = vmatpush.xpose.msra.mxu0 %v706
        %726 = vmatmul.f32.gmra.mxu0 %v704
        %v727 = vpop.f32.mrf.mxu0
        %v728 = vadd.f32 0.0, %v727
        %729 = vdwg.mxu0
        %v730 = vsel %vm570, %v693, 0
        %v732 = vsel %vm570, %v697, 0
        %v734 = vsel %vm570, %v699, 0
        %736 = vmatpush.xpose.msra.mxu0 0.0
        %737 = vmatpush.xpose.msra.mxu0 0.0
        %738 = vmatpush.xpose.msra.mxu0 0.0
        %739 = vmatpush.xpose.msra.mxu0 0.0
        %740 = vmatpush.xpose.msra.mxu0 0.0
        %741 = vmatpush.xpose.msra.mxu0 0.0
        %742 = vmatpush.xpose.msra.mxu0 0.0
        %743 = vmatpush.xpose.msra.mxu0 0.0
        %744 = vmatpush.xpose.msra.mxu0 0.0
        %745 = vmatpush.xpose.msra.mxu0 0.0
        %746 = vmatpush.xpose.msra.mxu0 0.0
        %747 = vmatpush.xpose.msra.mxu0 0.0
        %748 = vmatpush.xpose.msra.mxu0 0.0
        %749 = vmatpush.xpose.msra.mxu0 0.0
        %750 = vmatpush.xpose.msra.mxu0 %v734
        %751 = vmatpush.xpose.msra.mxu0 %v732
        %752 = vmatmul.f32.gmra.mxu0 %v730
        %v753 = vpop.f32.mrf.mxu0
        %v754 = vadd.f32 0.0, %v753
        %755 = vdwg.mxu0
        %v756 = vsel %vm570, %v728, -inf
        %757 = vmax.xlane.f32.xlu0 %v756
        %v758 = vpop.xlane.xlu0 %757
        %v759 = vsel %vm570, %v754, -inf
        %760 = vmax.xlane.f32.xlu0 %v759
        %v761 = vpop.xlane.xlu0 %760
        %v762 = vsub.f32 %v728, %v758
        %v763 = vsub.f32 %v754, %v761
        %v764 = vmul.f32 %v762, 1.442695
        %v765 = vpow.pop %v764
        %v766 = vmul.f32 %v763, 1.442695
        %v767 = vpow.pop %v766
        %v768 = vsel %vm570, %v765, 0.0
        %769 = vadd.xlane.f32.xlu0 %v768
        %v770 = vpop.xlane.xlu0 %769
        %v771 = vsel %vm570, %v767, 0.0
        %772 = vadd.xlane.f32.xlu0 %v771
        %v773 = vpop.xlane.xlu0 %772
        %v774 = vrcp.pop %v770
        %v775 = vrcp.pop %v773
        %v776 = vmul.f32 %v765, %v774
        %v777 = vmul.f32 %v767, %v775
        %778 = vrot.lane.b32.xlu0 %v686, 96
        %v779 = vpop.permute.xlu0 %778
        %780 = vrot.lane.b32.xlu0 %v689, 96
        %v781 = vpop.permute.xlu0 %780
        %v785 = vsel %vm570, %v776, 0
        %787 = vmatpush.msra.mxu0 0.0
        %788 = vmatpush.msra.mxu0 0.0
        %789 = vmatpush.msra.mxu0 0.0
        %790 = vmatpush.msra.mxu0 0.0
        %791 = vmatpush.msra.mxu0 0.0
        %792 = vmatpush.msra.mxu0 0.0
        %793 = vmatpush.msra.mxu0 0.0
        %794 = vmatpush.msra.mxu0 0.0
        %795 = vmatpush.msra.mxu0 0.0
        %796 = vmatpush.msra.mxu0 0.0
        %797 = vmatpush.msra.mxu0 0.0
        %798 = vmatpush.msra.mxu0 0.0
        %799 = vmatpush.msra.mxu0 0.0
        %800 = vmatpush.msra.mxu0 0.0
        %801 = vmatpush.msra.mxu0 %v781
        %802 = vmatpush.msra.mxu0 %v779
        %803 = vmatmul.f32.gmra.mxu0 %v785
        %v804 = vpop.f32.mrf.mxu0
        %v805 = vadd.f32 0.0, %v804
        %806 = vdwg.mxu0
        %807 = vrot.lane.b32.xlu0 %v697, 96
        %v808 = vpop.permute.xlu0 %807
        %809 = vrot.lane.b32.xlu0 %v699, 96
        %v810 = vpop.permute.xlu0 %809
        %v814 = vsel %vm570, %v777, 0
        %816 = vmatpush.msra.mxu0 0.0
        %817 = vmatpush.msra.mxu0 0.0
        %818 = vmatpush.msra.mxu0 0.0
        %819 = vmatpush.msra.mxu0 0.0
        %820 = vmatpush.msra.mxu0 0.0
        %821 = vmatpush.msra.mxu0 0.0
        %822 = vmatpush.msra.mxu0 0.0
        %823 = vmatpush.msra.mxu0 0.0
        %824 = vmatpush.msra.mxu0 0.0
        %825 = vmatpush.msra.mxu0 0.0
        %826 = vmatpush.msra.mxu0 0.0
        %827 = vmatpush.msra.mxu0 0.0
        %828 = vmatpush.msra.mxu0 0.0
        %829 = vmatpush.msra.mxu0 0.0
        %830 = vmatpush.msra.mxu0 %v810
        %831 = vmatpush.msra.mxu0 %v808
        %832 = vmatmul.f32.gmra.mxu0 %v814
        %v833 = vpop.f32.mrf.mxu0
        %v834 = vadd.f32 0.0, %v833
        %835 = vdwg.mxu0
        %v837 = vsel %vm570, %v805, 0
        %839 = vmatpush.msra.mxu0 0.0
        %840 = vmatpush.msra.mxu0 0.0
        %841 = vmatpush.msra.mxu0 0.0
        %842 = vmatpush.msra.mxu0 0.0
        %843 = vmatpush.msra.mxu0 0.0
        %844 = vmatpush.msra.mxu0 0.0
        %845 = vmatpush.msra.mxu0 0.0
        %846 = vmatpush.msra.mxu0 0.0
        %847 = vmatpush.msra.mxu0 0.0
        %848 = vmatpush.msra.mxu0 0.0
        %849 = vmatpush.msra.mxu0 0.0
        %850 = vmatpush.msra.mxu0 0.0
        %851 = vmatpush.msra.mxu0 0.0
        %852 = vmatpush.msra.mxu0 0.0
        %853 = vmatpush.msra.mxu0 %v701
        %854 = vmatpush.msra.mxu0 %v700
        %855 = vmatmul.f32.gmra.mxu0 %v837
        %v856 = vpop.f32.mrf.mxu0
        %v857 = vadd.f32 0.0, %v856
        %858 = vdwg.mxu0
        %v860 = vsel %vm570, %v834, 0
        %862 = vmatpush.msra.mxu0 0.0
        %863 = vmatpush.msra.mxu0 0.0
        %864 = vmatpush.msra.mxu0 0.0
        %865 = vmatpush.msra.mxu0 0.0
        %866 = vmatpush.msra.mxu0 0.0
        %867 = vmatpush.msra.mxu0 0.0
        %868 = vmatpush.msra.mxu0 0.0
        %869 = vmatpush.msra.mxu0 0.0
        %870 = vmatpush.msra.mxu0 0.0
        %871 = vmatpush.msra.mxu0 0.0
        %872 = vmatpush.msra.mxu0 0.0
        %873 = vmatpush.msra.mxu0 0.0
        %874 = vmatpush.msra.mxu0 0.0
        %875 = vmatpush.msra.mxu0 0.0
        %876 = vmatpush.msra.mxu0 %v703
        %877 = vmatpush.msra.mxu0 %v702
        %878 = vmatmul.f32.gmra.mxu0 %v860
        %v879 = vpop.f32.mrf.mxu0
        %v880 = vadd.f32 0.0, %v879
        %881 = vdwg.mxu0
        %v882 = vsel %vm530, %v857, 0.0
        %v883 = vsel %vm530, %v880, 0.0
        %v884 = vadd.f32 %v882, %v883
        %v885 = vadd.f32 %v525, %v884
        %v886 = vld [vmem:[%s9] sm:$0x1]
        %v887 = vld [vmem:[%s10] sm:$0x1]
        %v888 = vld [vmem:[%s11] sm:$0xff]
        %v889 = vld [vmem:[%s11 + $0x8] sm:$0xff]
        %v890 = vld [vmem:[%s11 + $0x10] sm:$0xff]
        %v891 = vld [vmem:[%s11 + $0x18] sm:$0xff]
        %v892 = vld [vmem:[%s12] sm:$0x1]
        %v893 = vld [vmem:[%s13] sm:$0xff]
        %v894 = vld [vmem:[%s13 + $0x8] sm:$0xff]
        %v895 = vld [vmem:[%s13 + $0x10] sm:$0xff]
        %v896 = vld [vmem:[%s13 + $0x18] sm:$0xff]
        %v897 = vld [vmem:[%s13 + $0x20] sm:$0xff]
        %v898 = vld [vmem:[%s13 + $0x28] sm:$0xff]
        %v899 = vld [vmem:[%s13 + $0x30] sm:$0xff]
        %v900 = vld [vmem:[%s13 + $0x38] sm:$0xff]
        %v901 = vld [vmem:[%s13 + $0x40] sm:$0xff]
        %v902 = vld [vmem:[%s13 + $0x48] sm:$0xff]
        %v903 = vld [vmem:[%s13 + $0x50] sm:$0xff]
        %v904 = vld [vmem:[%s13 + $0x58] sm:$0xff]
        %v905 = vld [vmem:[%s13 + $0x60] sm:$0xff]
        %v906 = vld [vmem:[%s13 + $0x68] sm:$0xff]
        %v907 = vld [vmem:[%s13 + $0x70] sm:$0xff]
        %v908 = vld [vmem:[%s13 + $0x78] sm:$0xff]
        %v909 = vld [vmem:[%s14] sm:$0x1]
        %v910 = vsel %vm530, %v885, 0.0
        %911 = vadd.xlane.f32.xlu0 %v910
        %v912 = vpop.xlane.xlu0 %911
        %v913 = vmul.f32 %v912, %v540
        %v914 = vsub.f32 %v885, %v913
        %v915 = vmul.f32 %v914, %v914
        %v916 = vsel %vm530, %v915, 0.0
        %917 = vadd.xlane.f32.xlu0 %v916
        %v918 = vpop.xlane.xlu0 %917
        %v919 = vmul.f32 %v918, %v540
        %v920 = vadd.f32 %v919, 1e-05
        %v921 = vrsqrt.pop %v920
        %v922 = vmul.f32 %v921, %v920
        %v923 = vmul.f32 %v922, %v921
        %v924 = vmul.f32 0.5, %v923
        %v925 = vsub.f32 1.5, %v924
        %v926 = vmul.f32 %v921, %v925
        %vm927 = vweird.f32 %v920
        %vm928 = vweird.f32 %v921
        %vm929 = vmor %vm927, %vm928
        %v930 = vsel %vm929, %v921, %v926
        %v931 = vmul.f32 %v914, %v930
        %v933 = vperm.slane %v886, 0
        %v935 = vmul.f32 %v931, %v933
        %v937 = vperm.slane %v887, 0
        %v939 = vadd.f32 %v935, %v937
        %v941 = vperm.slane %v892, 0
        %v944 = vsel %vm530, %v939, 0
        %946 = vmatpush.msra.mxu0 0.0
        %947 = vmatpush.msra.mxu0 0.0
        %948 = vmatpush.msra.mxu0 0.0
        %949 = vmatpush.msra.mxu0 0.0
        %950 = vmatpush.msra.mxu0 0.0
        %951 = vmatpush.msra.mxu0 0.0
        %952 = vmatpush.msra.mxu0 0.0
        %953 = vmatpush.msra.mxu0 0.0
        %954 = vmatpush.msra.mxu0 0.0
        %955 = vmatpush.msra.mxu0 0.0
        %956 = vmatpush.msra.mxu0 0.0
        %957 = vmatpush.msra.mxu0 0.0
        %958 = vmatpush.msra.mxu0 %v891
        %959 = vmatpush.msra.mxu0 %v890
        %960 = vmatpush.msra.mxu0 %v889
        %961 = vmatpush.msra.mxu0 %v888
        %962 = vmatmul.f32.gmra.mxu0 %v944
        %v963 = vpop.f32.mrf.mxu0
        %v964 = vadd.f32 %v941, %v963
        %965 = vdwg.mxu0
        %v966 = vmul.f32 %v964, 0.5
        %v967 = vmul.f32 %v964, 0.70710677
        %v968 = vmul.f32 %v967, %v967
        %v969 = vmin.f32 16.0, %v968
        %v970 = vmul.f32 %v969, 2.1237322e-06
        %v971 = vadd.f32 %v970, 0.00028619796
        %v972 = vmul.f32 %v969, %v971
        %v973 = vadd.f32 %v972, 0.0036580483
        %v974 = vmul.f32 %v969, %v973
        %v975 = vadd.f32 %v974, 0.05243302
        %v976 = vmul.f32 %v969, %v975
        %v977 = vadd.f32 %v976, 0.18741608
        %v978 = vmul.f32 %v969, %v977
        %v979 = vadd.f32 %v978, 1.1283791
        %v980 = vmul.f32 %v967, %v979
        %v981 = vmul.f32 %v969, 3.8918573e-05
        %v982 = vadd.f32 %v981, 0.001143296
        %v983 = vmul.f32 %v969, %v982
        %v984 = vadd.f32 %v983, 0.014752088
        %v985 = vmul.f32 %v969, %v984
        %v986 = vadd.f32 %v985, 0.112945676
        %v987 = vmul.f32 %v969, %v986
        %v988 = vadd.f32 %v987, 0.4994258
        %v989 = vmul.f32 %v969, %v988
        %v990 = vadd.f32 %v989, 1.0
        %v991 = vrcp.pop %v990
        %v992 = vmul.f32 %v990, %v991
        %v993 = vsub.f32 1.0, %v992
        %v994 = vmul.f32 %v991, %v993
        %v995 = vadd.f32 %v991, %v994
        %vm996 = vweird.f32 %v990
        %vm997 = vweird.f32 %v991
        %vm998 = vmor %vm996, %vm997
        %v999 = vsel %vm998, %v991, %v995
        %v1000 = vand.u32 2147483647, %v990
        %vm1001 = vcmp.eq.f32.partialorder %v1000, 8.507059e+37
        %v1002 = vand.u32 %v990, 2147483648
        %v1003 = vor.u32 1.1754944e-38, %v1002
        %v1004 = vsel %vm1001, %v1003, %v999
        %v1005 = vmul.f32 %v980, %v1004
        %v1006 = vmin.f32 %v1005, 1.0
        %v1007 = vmax.f32 %v1006, -1.0
        %v1008 = vadd.f32 %v1007, 1.0
        %v1009 = vmul.f32 %v966, %v1008
        %v1011 = vperm.slane %v909, 0
        %1013 = vmatpush.msra.mxu0 %v908
        %1014 = vmatpush.msra.mxu0 %v907
        %1015 = vmatpush.msra.mxu0 %v906
        %1016 = vmatpush.msra.mxu0 %v905
        %1017 = vmatpush.msra.mxu0 %v904
        %1018 = vmatpush.msra.mxu0 %v903
        %1019 = vmatpush.msra.mxu0 %v902
        %1020 = vmatpush.msra.mxu0 %v901
        %1021 = vmatpush.msra.mxu0 %v900
        %1022 = vmatpush.msra.mxu0 %v899
        %1023 = vmatpush.msra.mxu0 %v898
        %1024 = vmatpush.msra.mxu0 %v897
        %1025 = vmatpush.msra.mxu0 %v896
        %1026 = vmatpush.msra.mxu0 %v895
        %1027 = vmatpush.msra.mxu0 %v894
        %1028 = vmatpush.msra.mxu0 %v893
        %1029 = vmatmul.f32.gmra.mxu0 %v1009
        %v1030 = vpop.f32.mrf.mxu0
        %v1031 = vadd.f32 %v1011, %v1030
        %1032 = vdwg.mxu0
        %v1033 = vadd.f32 %v885, %v1031
        %1034 = vst.msk [vmem:[%s515] sm:$0xff] %vm530, %v1033
        %s1035 = sand.u32 %s363, 1
        %s1036 = scalar_lea.sflag [#allocation4], %s1035
        %s1037 = sand.u32 %s363, 1
        %s1038 = smul.addr %s1037, 8
        %s1039 = scalar_lea.vmem [#allocation5], %s1038
        // Predicated region
        $region85: #{tpu_custom_call.1} parent=79 // pred_check
          %p1040 = pneg %p373
        $region86: #{tpu_custom_call.1} parent=79 // pred_check_branch
          %1042 = sbr.rel (%p1040) target = $region88
        $region87: #{tpu_custom_call.1} parent=79 // pred_region
          %1044 = vsyncadd %s1036, 0
          %s1045 = smul.addr %s30, 8
          %s1046 = scalar_lea.hbm %s15, %s1045
          %s1048 = sshll.u32 %s1039, 4
          %s1049 = int_to_ptr.vmem [resolvable:$true] %s1048
          %s1050 = sshll.u32 %s1046, 4
          %s1051 = int_to_ptr.hbm [resolvable:$true] %s1050
          %1053 = dma.vmem_to_hbm [thread:$0]  %s1049, 128, %s1051, %s1036
        $region88: #{tpu_custom_call.1} parent=79 // pred_fallthru
          _
      $region80: #{tpu_custom_call.1} parent=5 // pred_fallthru
        _
      %p1054 = scmp.le.s32.totalorder 2, %s25
      // Predicated region
      $region89: #{tpu_custom_call.1} parent=5 // pred_check
        %p1055 = pneg %p1054
      $region90: #{tpu_custom_call.1} parent=5 // pred_check_branch
        %1057 = sbr.rel (%p1055) target = $region92
      $region91: #{tpu_custom_call.1} parent=5 // pred_region
        %s1058 = ssub.s32 %s25, 2
        // Predicated region
        $region93: #{tpu_custom_call.1} parent=91 // pred_check
          %p1059 = pneg %p379
        $region94: #{tpu_custom_call.1} parent=91 // pred_check_branch
          %1061 = sbr.rel (%p1059) target = $region96
        $region95: #{tpu_custom_call.1} parent=91 // pred_region
          %s1062 = sand.u32 %s364, 1
          %s1063 = scalar_lea.sflag [#allocation4], %s1062
          %s1064 = sand.u32 %s364, 1
          %s1065 = smul.addr %s1064, 8
          %s1066 = scalar_lea.vmem [#allocation5], %s1065
          %1068 = dma.done %s1063, 128
        $region96: #{tpu_custom_call.1} parent=91 // pred_fallthru
          _
      $region92: #{tpu_custom_call.1} parent=5 // pred_fallthru
        _
    $region6: #{tpu_custom_call.1} parent=1 // loop_footer
      %s29 = sadd.s32 1, %s25
    $region7: #{tpu_custom_call.1} parent=1 // loop_footer_branch
      %24 = sbr.rel target = $region3
    $region8: #{tpu_custom_call.1} parent=1 // loop_exit
      _
    %1069 = vsyncpa [#allocation3], 1
    %s1070 = scalar_lea.sflag [#allocation3], 1
    %1071 = vsyncpa %s1070, 1
    %1072 = vsyncpa [#allocation4], 1
    %s1073 = scalar_lea.sflag [#allocation4], 1
    %1074 = vsyncpa %s1073, 1

</llo_original>
